<compile_context>
chip_gen: v6e
topology: v6e:2x2x1
jax: 0.10.0
libtpu: 0.0.40
codegen_flags: <defaults>
</compile_context>

<pallas_src>
import jax
import jax.numpy as jnp
from jax.experimental import pallas as pl
from jax.experimental.pallas import tpu as pltpu

CHANNELS = 64
EMBED_DIM = 32
INTER_CHANNELS = 32
GN_EPS = 1e-5

_VMEM = pl.BlockSpec(memory_space=pltpu.MemorySpace.VMEM)

# Packed-parameter row layout (one (NUM_PARAM_ROWS, CHANNELS) f32 input).
ROW_BC1, ROW_BC2, ROW_PW1 = 0, 1, 2
ROW_GN1A, ROW_GN1G, ROW_GN1B = 3, 4, 5
ROW_GN2A, ROW_GN2G, ROW_GN2B = 6, 7, 8
ROW_BL1, ROW_PW2, ROW_WL3, ROW_BL3 = 9, 10, 11, 12
NUM_PARAM_ROWS = 16  # padded to a sublane multiple


# ---------------------------------------------------------------------------
# Fused Pallas kernel: conv1 -> GN1 -> PReLU -> conv2 -> PReLU -> GN2 ->
#                      mean/max pool -> lin1 -> PReLU -> lin3
# ---------------------------------------------------------------------------
def _make_fused_kernel(num_graphs, mm_dtype):
    """num_graphs / mm_dtype are static compile-time constants."""

    def kernel(a1_ref, a2_ref, x_ref, brow_ref, bcol_ref,
               wc1_ref, wc2_ref, w1_ref, pp_ref, o_ref):
        n = x_ref.shape[0]

        # --- packed 1-row parameters (single VMEM input, static slices) ---
        pp = pp_ref[...]                                   # (16, 64)
        bc1 = pp[ROW_BC1:ROW_BC1 + 1, :]
        bc2 = pp[ROW_BC2:ROW_BC2 + 1, :]
        pw1 = pp[ROW_PW1:ROW_PW1 + 1, :]                   # hoisted, reused twice
        gn1a = pp[ROW_GN1A:ROW_GN1A + 1, :]
        gn1g = pp[ROW_GN1G:ROW_GN1G + 1, :]
        gn1b = pp[ROW_GN1B:ROW_GN1B + 1, :]
        gn2a = pp[ROW_GN2A:ROW_GN2A + 1, :]
        gn2g = pp[ROW_GN2G:ROW_GN2G + 1, :]
        gn2b = pp[ROW_GN2B:ROW_GN2B + 1, :]
        bl1 = pp[ROW_BL1:ROW_BL1 + 1, :INTER_CHANNELS]
        pw2 = pp[ROW_PW2:ROW_PW2 + 1, :INTER_CHANNELS]
        wl3 = pp[ROW_WL3:ROW_WL3 + 1, :INTER_CHANNELS]
        bl3 = pp[ROW_BL3:ROW_BL3 + 1, 0:1]

        # --- graph membership from the batch vector (no dense seg/segt) ---
        brow = brow_ref[...]                               # (1, N) int32
        bcol = bcol_ref[...]                               # (N, 1) int32
        gid = jax.lax.broadcasted_iota(jnp.int32, (num_graphs, n), 0)
        seg = (gid == brow).astype(jnp.float32)            # (G, N) one-hot
        counts = jnp.sum(seg, axis=1, keepdims=True)       # (G, 1)
        invcnt = jnp.where(counts > 0.0, 1.0 / counts, 0.0)
        # Per-graph column masks (N, 1), unrolled (G is a tiny static int).
        # TODO(synk): if num_graphs grows beyond ~8, switch this and the
        #             pooling loop to lax.fori_loop / a grid axis.
        col_mask = [(bcol == g).astype(jnp.float32) for g in range(num_graphs)]

        def scatter_back(stat):
            # (G, C) -> (N, C): each node picks its graph's row.  Pure VPU
            # mask-multiplies; avoids the K=G broadcast-back matmuls.
            out = col_mask[0] * stat[0:1, :]
            for g in range(1, num_graphs):
                out = out + col_mask[g] * stat[g:g + 1, :]
            return out

        def graph_norm(h, alpha, gamma, beta):
            # PyG GraphNorm: per-graph mean/var with learnable mean-scale alpha.
            mean = jnp.dot(seg, h, preferred_element_type=jnp.float32) * invcnt
            centered = h - alpha * scatter_back(mean)
            var = jnp.dot(seg, centered * centered,
                          preferred_element_type=jnp.float32) * invcnt
            return gamma * centered * jax.lax.rsqrt(scatter_back(var) + GN_EPS) + beta

        def prelu(h, w):
            return jnp.where(h >= 0.0, h, w * h)

        cast = lambda v: v.astype(mm_dtype)

        # --- conv1: (A1 @ X) @ Wc1 + b1 ---
        ax = jnp.dot(cast(a1_ref[...]), cast(x_ref[...]),
                     preferred_element_type=jnp.float32)          # (N, 32)
        h = jnp.dot(ax, wc1_ref[...],
                    preferred_element_type=jnp.float32) + bc1     # (N, 64)

        # --- GraphNorm1 + PReLU; dropout = identity (eval) ---
        h = graph_norm(h, gn1a, gn1g, gn1b)
        h = prelu(h, pw1)

        # --- conv2 (edge_attr-weighted adjacency): A2 @ (h @ Wc2) + b2 ---
        hw = jnp.dot(h, wc2_ref[...], preferred_element_type=jnp.float32)
        h = jnp.dot(cast(a2_ref[...]), cast(hw),
                    preferred_element_type=jnp.float32) + bc2     # (N, 64)
        h = prelu(h, pw1)            # Net6 shares weight1 for both PReLUs
        h = graph_norm(h, gn2a, gn2g, gn2b)
        # dropout(p=0.5): identity (eval mode)

        # --- global mean pool: one (G,N)x(N,C) dot ---
        mean_pool = jnp.dot(seg, h, preferred_element_type=jnp.float32) * invcnt

        # --- global max pool: per-graph masked max, rows kept in vregs ---
        rows = []
        for g in range(num_graphs):
            masked = jnp.where(col_mask[g] > 0.0, h, jnp.float32(-1e30))
            row = jnp.max(masked, axis=0, keepdims=True)          # (1, C)
            # Empty-graph guard: mirror mean_pool's 0 instead of the sentinel.
            rows.append(jnp.where(counts[g:g + 1, :] > 0.0, row, 0.0))
        max_pool = jnp.concatenate(rows, axis=0)                  # (G, C)

        # --- lin1 on cat([mean, max], dim=1): split-K form (no lane concat) ---
        z = (jnp.dot(mean_pool, w1_ref[0:CHANNELS, :],
                     preferred_element_type=jnp.float32)
             + jnp.dot(max_pool, w1_ref[CHANNELS:2 * CHANNELS, :],
                       preferred_element_type=jnp.float32)
             + bl1)                                               # (G, IC)
        z = prelu(z, pw2)
        # dropout(p=0.5): identity (eval mode)

        # --- lin3 as a VPU multiply + lane reduce (weight lives in pp) ---
        o_ref[...] = jnp.sum(z * wl3, axis=1, keepdims=True) + bl3   # (G, 1)

    return kernel


# ---------------------------------------------------------------------------
# Wrapper
# ---------------------------------------------------------------------------
def _tile_padded_bytes(shape, itemsize):
    """Bytes of an array once padded to (8,128) VMEM tiles."""
    if len(shape) == 1:
        r, c = 1, shape[0]
        lead = 1
    else:
        r, c = shape[-2], shape[-1]
        lead = 1
        for d in shape[:-2]:
            lead *= d
    return lead * (-(-r // 8) * 8) * (-(-c // 128) * 128) * itemsize


def _pack_params(params):
    def pad_row(v):
        v = jnp.asarray(v, jnp.float32).reshape(-1)
        return jnp.pad(v, (0, CHANNELS - v.shape[0]))

    rows = [
        pad_row(params["b_c1"]), pad_row(params["b_c2"]), pad_row(params["weight1"]),
        pad_row(params["gn1_alpha"]), pad_row(params["gn1_gamma"]), pad_row(params["gn1_beta"]),
        pad_row(params["gn2_alpha"]), pad_row(params["gn2_gamma"]), pad_row(params["gn2_beta"]),
        pad_row(params["b_lin1"]), pad_row(params["weight2"]),
        pad_row(params["w_lin3"].reshape(-1)), pad_row(params["b_lin3"]),
    ]
    rows += [jnp.zeros((CHANNELS,), jnp.float32)] * (NUM_PARAM_ROWS - len(rows))
    return jnp.stack(rows, axis=0)                  # (16, 64)


def net6_fused(a1, a2, x, batch, num_graphs, params, use_bf16_matmul=False):
    n = x.shape[0]
    g = int(num_graphs)

    mm_dtype = jnp.bfloat16 if use_bf16_matmul else jnp.float32
    a1 = a1.astype(mm_dtype)
    a2 = a2.astype(mm_dtype)

    batch_row = batch.reshape(1, n).astype(jnp.int32)
    batch_col = batch.reshape(n, 1).astype(jnp.int32)
    packed = _pack_params(params)

    inputs = (a1, a2, x, batch_row, batch_col,
              params["w_c1"], params["w_c2"], params["w_lin1"], packed)

    # Generation-aware VMEM budget: exact padded input/output bytes plus an
    # estimate of the in-kernel temporaries (gridless call = single-buffered).
    io_bytes = sum(_tile_padded_bytes(v.shape, v.dtype.itemsize) for v in inputs)
    io_bytes += _tile_padded_bytes((g, 1), 4)
    temp_bytes = (12 * _tile_padded_bytes((n, CHANNELS), 4)
                  + 2 * _tile_padded_bytes((n, n), 4))
    try:
        cap = pltpu.get_tpu_info().vmem_capacity_bytes
    except Exception:  # pragma: no cover - conservative fallback
        cap = 64 * 2 ** 20
    vmem_limit = int(min(int(0.75 * cap),
                         max(16 * 2 ** 20, 2 * (io_bytes + temp_bytes))))

    return pl.pallas_call(
        _make_fused_kernel(g, mm_dtype),
        out_shape=jax.ShapeDtypeStruct((g, 1), jnp.float32),
        in_specs=[_VMEM] * len(inputs),
        out_specs=_VMEM,
        compiler_params=pltpu.CompilerParams(vmem_limit_bytes=vmem_limit),
    )(*inputs)


# ---------------------------------------------------------------------------
# Plain-JAX glue (graph setup, parameter init)
# ---------------------------------------------------------------------------
def build_gcn_adj(edge_index, edge_weight, num_nodes):
    """Dense D^{-1/2} (A + remaining self loops) D^{-1/2}; rows = dst nodes."""
    src, dst = edge_index[0], edge_index[1]
    a = jnp.zeros((num_nodes, num_nodes), jnp.float32)
    a = a.at[dst, src].add(edge_weight.astype(jnp.float32))
    # add_remaining_self_loops: weight-1 loop only where no self loop exists.
    # (Approximated via diag == 0; identical for positive edge weights.)
    diag = jnp.diagonal(a)
    a = a + jnp.diag(jnp.where(diag == 0.0, 1.0, 0.0))
    deg = a.sum(axis=1)
    dinv = jnp.where(deg > 0, jax.lax.rsqrt(deg), 0.0)
    return dinv[:, None] * a * dinv[None, :]


def init_params(key):
    ks = jax.random.split(key, 6)

    def lin_init(k, fan_in, shape):
        return jax.random.normal(k, shape, jnp.float32) / jnp.sqrt(float(fan_in))

    return {
        "w_c1": lin_init(ks[0], EMBED_DIM, (EMBED_DIM, CHANNELS)),
        "b_c1": jnp.zeros((CHANNELS,), jnp.float32),
        "w_c2": lin_init(ks[1], CHANNELS, (CHANNELS, CHANNELS)),
        "b_c2": jnp.zeros((CHANNELS,), jnp.float32),
        "weight1": jnp.full((CHANNELS,), 0.25, jnp.float32),
        "weight2": jnp.full((INTER_CHANNELS,), 0.25, jnp.float32),
        "gn1_alpha": jnp.ones((CHANNELS,), jnp.float32),
        "gn1_gamma": jnp.ones((CHANNELS,), jnp.float32),
        "gn1_beta": jnp.zeros((CHANNELS,), jnp.float32),
        "gn2_alpha": jnp.ones((CHANNELS,), jnp.float32),
        "gn2_gamma": jnp.ones((CHANNELS,), jnp.float32),
        "gn2_beta": jnp.zeros((CHANNELS,), jnp.float32),
        "w_lin1": lin_init(ks[2], 2 * CHANNELS, (2 * CHANNELS, INTER_CHANNELS)),
        "b_lin1": lin_init(ks[3], 2 * CHANNELS, (INTER_CHANNELS,)),
        "w_lin3": lin_init(ks[4], INTER_CHANNELS, (INTER_CHANNELS, 1)),
        "b_lin3": lin_init(ks[5], INTER_CHANNELS, (1,)),
    }


def net6_forward(params, x, edge_index, edge_attr, batch, num_graphs):
    n = x.shape[0]
    ones = jnp.ones((edge_index.shape[1],), jnp.float32)
    a1 = build_gcn_adj(edge_index, ones, n)          # conv1: unweighted edges
    a2 = build_gcn_adj(edge_index, edge_attr, n)     # conv2: edge_attr weights
    out = net6_fused(a1, a2, x, batch, num_graphs, params)
    return out.squeeze(-1)                           # (num_graphs,)


if __name__ == "__main__":
    key = jax.random.PRNGKey(0)
    k_x, k_src, k_dst, k_attr, k_par = jax.random.split(key, 5)

    N_NODES, N_GRAPHS, N_EDGES = 16, 2, 40
    x = jax.random.normal(k_x, (N_NODES, EMBED_DIM), jnp.float32)
    src = jax.random.randint(k_src, (N_EDGES,), 0, N_NODES)
    dst = jax.random.randint(k_dst, (N_EDGES,), 0, N_NODES)
    edge_index = jnp.stack([src, dst]).astype(jnp.int32)
    edge_attr = jax.random.uniform(k_attr, (N_EDGES,), jnp.float32, 0.1, 1.0)
    batch = jnp.array([0] * 9 + [1] * 7, jnp.int32)   # 16 nodes, 2 graphs

    params = init_params(k_par)
    out = net6_forward(params, x, edge_index, edge_attr, batch, N_GRAPHS)
    jax.block_until_ready(out)
    assert out.shape == (N_GRAPHS,)
    print("KERNEL_OK")
</pallas_src>

<mosaic_0001>
module attributes {stable_mosaic.version = 11 : i64} {
  func.func @kernel(%arg0: memref<16x16xf32, #tpu.memory_space<vmem>>, %arg1: memref<16x16xf32, #tpu.memory_space<vmem>>, %arg2: memref<16x32xf32, #tpu.memory_space<vmem>>, %arg3: memref<1x16xi32, #tpu.memory_space<vmem>>, %arg4: memref<16x1xi32, #tpu.memory_space<vmem>>, %arg5: memref<32x64xf32, #tpu.memory_space<vmem>>, %arg6: memref<64x64xf32, #tpu.memory_space<vmem>>, %arg7: memref<128x32xf32, #tpu.memory_space<vmem>>, %arg8: memref<16x64xf32, #tpu.memory_space<vmem>>, %arg9: memref<2x1xf32, #tpu.memory_space<vmem>>) attributes {dimension_semantics = [], scalar_prefetch = 0 : i64, scratch_operands = 0 : i64, tpu.core_type = #tpu.core_type<tc>} {
    %c0 = arith.constant 0 : index
    %c0_0 = arith.constant 0 : index
    %0 = vector.load %arg8[%c0, %c0_0] : memref<16x64xf32, #tpu.memory_space<vmem>>, vector<16x64xf32>
    %1 = vector.extract_strided_slice %0 {offsets = [0, 0], sizes = [1, 64], strides = [1, 1]} : vector<16x64xf32> to vector<1x64xf32>
    %2 = vector.extract_strided_slice %0 {offsets = [1, 0], sizes = [1, 64], strides = [1, 1]} : vector<16x64xf32> to vector<1x64xf32>
    %3 = vector.extract_strided_slice %0 {offsets = [2, 0], sizes = [1, 64], strides = [1, 1]} : vector<16x64xf32> to vector<1x64xf32>
    %4 = vector.extract_strided_slice %0 {offsets = [3, 0], sizes = [1, 64], strides = [1, 1]} : vector<16x64xf32> to vector<1x64xf32>
    %5 = vector.extract_strided_slice %0 {offsets = [4, 0], sizes = [1, 64], strides = [1, 1]} : vector<16x64xf32> to vector<1x64xf32>
    %6 = vector.extract_strided_slice %0 {offsets = [5, 0], sizes = [1, 64], strides = [1, 1]} : vector<16x64xf32> to vector<1x64xf32>
    %7 = vector.extract_strided_slice %0 {offsets = [6, 0], sizes = [1, 64], strides = [1, 1]} : vector<16x64xf32> to vector<1x64xf32>
    %8 = vector.extract_strided_slice %0 {offsets = [7, 0], sizes = [1, 64], strides = [1, 1]} : vector<16x64xf32> to vector<1x64xf32>
    %9 = vector.extract_strided_slice %0 {offsets = [8, 0], sizes = [1, 64], strides = [1, 1]} : vector<16x64xf32> to vector<1x64xf32>
    %10 = vector.extract_strided_slice %0 {offsets = [9, 0], sizes = [1, 32], strides = [1, 1]} : vector<16x64xf32> to vector<1x32xf32>
    %11 = vector.extract_strided_slice %0 {offsets = [10, 0], sizes = [1, 32], strides = [1, 1]} : vector<16x64xf32> to vector<1x32xf32>
    %12 = vector.extract_strided_slice %0 {offsets = [11, 0], sizes = [1, 32], strides = [1, 1]} : vector<16x64xf32> to vector<1x32xf32>
    %13 = vector.extract_strided_slice %0 {offsets = [12, 0], sizes = [1, 1], strides = [1, 1]} : vector<16x64xf32> to vector<1x1xf32>
    %c0_1 = arith.constant 0 : index
    %c0_2 = arith.constant 0 : index
    %14 = vector.load %arg3[%c0_1, %c0_2] : memref<1x16xi32, #tpu.memory_space<vmem>>, vector<1x16xi32>
    %c0_3 = arith.constant 0 : index
    %c0_4 = arith.constant 0 : index
    %15 = vector.load %arg4[%c0_3, %c0_4] : memref<16x1xi32, #tpu.memory_space<vmem>>, vector<16x1xi32>
    %16 = tpu.iota {dimensions = array<i32: 0>} : vector<2x16xi32>
    %17 = vector.broadcast %14 : vector<1x16xi32> to vector<2x16xi32>
    %18 = arith.cmpi eq, %16, %17 : vector<2x16xi32>
    %19 = arith.extui %18 : vector<2x16xi1> to vector<2x16xi32>
    %20 = arith.sitofp %19 : vector<2x16xi32> to vector<2x16xf32>
    %cst = arith.constant dense<0.000000e+00> : vector<2xf32>
    %21 = vector.multi_reduction <add>, %20, %cst [1] : vector<2x16xf32> to vector<2xf32>
    %22 = vector.shape_cast %21 : vector<2xf32> to vector<2x1xf32>
    %cst_5 = arith.constant 0.000000e+00 : f32
    %23 = vector.broadcast %cst_5 : f32 to vector<2x1xf32>
    %24 = arith.cmpf ogt, %22, %23 : vector<2x1xf32>
    %cst_6 = arith.constant 1.000000e+00 : f32
    %25 = vector.broadcast %cst_6 : f32 to vector<2x1xf32>
    %26 = arith.divf %25, %22 : vector<2x1xf32>
    %cst_7 = arith.constant 0.000000e+00 : f32
    %27 = vector.broadcast %cst_7 : f32 to vector<2x1xf32>
    %28 = arith.select %24, %26, %27 : vector<2x1xi1>, vector<2x1xf32>
    %c0_i32 = arith.constant 0 : i32
    %29 = vector.broadcast %c0_i32 : i32 to vector<16x1xi32>
    %30 = arith.cmpi eq, %15, %29 : vector<16x1xi32>
    %31 = arith.extui %30 : vector<16x1xi1> to vector<16x1xi32>
    %32 = arith.sitofp %31 : vector<16x1xi32> to vector<16x1xf32>
    %c1_i32 = arith.constant 1 : i32
    %33 = vector.broadcast %c1_i32 : i32 to vector<16x1xi32>
    %34 = arith.cmpi eq, %15, %33 : vector<16x1xi32>
    %35 = arith.extui %34 : vector<16x1xi1> to vector<16x1xi32>
    %36 = arith.sitofp %35 : vector<16x1xi32> to vector<16x1xf32>
    %c0_8 = arith.constant 0 : index
    %c0_9 = arith.constant 0 : index
    %37 = vector.load %arg0[%c0_8, %c0_9] : memref<16x16xf32, #tpu.memory_space<vmem>>, vector<16x16xf32>
    %c0_10 = arith.constant 0 : index
    %c0_11 = arith.constant 0 : index
    %38 = vector.load %arg2[%c0_10, %c0_11] : memref<16x32xf32, #tpu.memory_space<vmem>>, vector<16x32xf32>
    %cst_12 = arith.constant dense<0.000000e+00> : vector<16x32xf32>
    %39 = tpu.matmul %37, %38, %cst_12 {dimension_numbers = #tpu.dot_dimension_numbers<[1], [0], [0], [1], [0, 0, 1, 1], [], []>} : vector<16x16xf32>, vector<16x32xf32>, vector<16x32xf32> -> vector<16x32xf32>
    %c0_13 = arith.constant 0 : index
    %c0_14 = arith.constant 0 : index
    %40 = vector.load %arg5[%c0_13, %c0_14] : memref<32x64xf32, #tpu.memory_space<vmem>>, vector<32x64xf32>
    %cst_15 = arith.constant dense<0.000000e+00> : vector<16x64xf32>
    %41 = tpu.matmul %39, %40, %cst_15 {dimension_numbers = #tpu.dot_dimension_numbers<[1], [0], [0], [1], [0, 0, 1, 1], [], []>} : vector<16x32xf32>, vector<32x64xf32>, vector<16x64xf32> -> vector<16x64xf32>
    %42 = vector.broadcast %1 : vector<1x64xf32> to vector<16x64xf32>
    %43 = arith.addf %41, %42 : vector<16x64xf32>
    %cst_16 = arith.constant dense<0.000000e+00> : vector<2x64xf32>
    %44 = tpu.matmul %20, %43, %cst_16 {dimension_numbers = #tpu.dot_dimension_numbers<[1], [0], [0], [1], [0, 0, 1, 1], [], []>} : vector<2x16xf32>, vector<16x64xf32>, vector<2x64xf32> -> vector<2x64xf32>
    %45 = vector.broadcast %28 : vector<2x1xf32> to vector<2x64xf32>
    %46 = arith.mulf %44, %45 : vector<2x64xf32>
    %47 = vector.extract_strided_slice %46 {offsets = [0, 0], sizes = [1, 64], strides = [1, 1]} : vector<2x64xf32> to vector<1x64xf32>
    %48 = vector.broadcast %32 : vector<16x1xf32> to vector<16x64xf32>
    %49 = vector.broadcast %47 : vector<1x64xf32> to vector<16x64xf32>
    %50 = arith.mulf %48, %49 : vector<16x64xf32>
    %51 = vector.extract_strided_slice %46 {offsets = [1, 0], sizes = [1, 64], strides = [1, 1]} : vector<2x64xf32> to vector<1x64xf32>
    %52 = vector.broadcast %36 : vector<16x1xf32> to vector<16x64xf32>
    %53 = vector.broadcast %51 : vector<1x64xf32> to vector<16x64xf32>
    %54 = arith.mulf %52, %53 : vector<16x64xf32>
    %55 = arith.addf %50, %54 : vector<16x64xf32>
    %56 = vector.broadcast %4 : vector<1x64xf32> to vector<16x64xf32>
    %57 = arith.mulf %56, %55 : vector<16x64xf32>
    %58 = arith.subf %43, %57 : vector<16x64xf32>
    %59 = arith.mulf %58, %58 : vector<16x64xf32>
    %cst_17 = arith.constant dense<0.000000e+00> : vector<2x64xf32>
    %60 = tpu.matmul %20, %59, %cst_17 {dimension_numbers = #tpu.dot_dimension_numbers<[1], [0], [0], [1], [0, 0, 1, 1], [], []>} : vector<2x16xf32>, vector<16x64xf32>, vector<2x64xf32> -> vector<2x64xf32>
    %61 = vector.broadcast %28 : vector<2x1xf32> to vector<2x64xf32>
    %62 = arith.mulf %60, %61 : vector<2x64xf32>
    %63 = vector.broadcast %5 : vector<1x64xf32> to vector<16x64xf32>
    %64 = arith.mulf %63, %58 : vector<16x64xf32>
    %65 = vector.extract_strided_slice %62 {offsets = [0, 0], sizes = [1, 64], strides = [1, 1]} : vector<2x64xf32> to vector<1x64xf32>
    %66 = vector.broadcast %32 : vector<16x1xf32> to vector<16x64xf32>
    %67 = vector.broadcast %65 : vector<1x64xf32> to vector<16x64xf32>
    %68 = arith.mulf %66, %67 : vector<16x64xf32>
    %69 = vector.extract_strided_slice %62 {offsets = [1, 0], sizes = [1, 64], strides = [1, 1]} : vector<2x64xf32> to vector<1x64xf32>
    %70 = vector.broadcast %36 : vector<16x1xf32> to vector<16x64xf32>
    %71 = vector.broadcast %69 : vector<1x64xf32> to vector<16x64xf32>
    %72 = arith.mulf %70, %71 : vector<16x64xf32>
    %73 = arith.addf %68, %72 : vector<16x64xf32>
    %cst_18 = arith.constant 9.99999974E-6 : f32
    %74 = vector.broadcast %cst_18 : f32 to vector<16x64xf32>
    %75 = arith.addf %73, %74 : vector<16x64xf32>
    %76 = math.rsqrt %75 : vector<16x64xf32>
    %77 = arith.mulf %64, %76 : vector<16x64xf32>
    %78 = vector.broadcast %6 : vector<1x64xf32> to vector<16x64xf32>
    %79 = arith.addf %77, %78 : vector<16x64xf32>
    %cst_19 = arith.constant 0.000000e+00 : f32
    %80 = vector.broadcast %cst_19 : f32 to vector<16x64xf32>
    %81 = arith.cmpf oge, %79, %80 : vector<16x64xf32>
    %82 = vector.broadcast %3 : vector<1x64xf32> to vector<16x64xf32>
    %83 = arith.mulf %82, %79 : vector<16x64xf32>
    %84 = arith.select %81, %79, %83 : vector<16x64xi1>, vector<16x64xf32>
    %c0_20 = arith.constant 0 : index
    %c0_21 = arith.constant 0 : index
    %85 = vector.load %arg6[%c0_20, %c0_21] : memref<64x64xf32, #tpu.memory_space<vmem>>, vector<64x64xf32>
    %cst_22 = arith.constant dense<0.000000e+00> : vector<16x64xf32>
    %86 = tpu.matmul %84, %85, %cst_22 {dimension_numbers = #tpu.dot_dimension_numbers<[1], [0], [0], [1], [0, 0, 1, 1], [], []>} : vector<16x64xf32>, vector<64x64xf32>, vector<16x64xf32> -> vector<16x64xf32>
    %c0_23 = arith.constant 0 : index
    %c0_24 = arith.constant 0 : index
    %87 = vector.load %arg1[%c0_23, %c0_24] : memref<16x16xf32, #tpu.memory_space<vmem>>, vector<16x16xf32>
    %cst_25 = arith.constant dense<0.000000e+00> : vector<16x64xf32>
    %88 = tpu.matmul %87, %86, %cst_25 {dimension_numbers = #tpu.dot_dimension_numbers<[1], [0], [0], [1], [0, 0, 1, 1], [], []>} : vector<16x16xf32>, vector<16x64xf32>, vector<16x64xf32> -> vector<16x64xf32>
    %89 = vector.broadcast %2 : vector<1x64xf32> to vector<16x64xf32>
    %90 = arith.addf %88, %89 : vector<16x64xf32>
    %cst_26 = arith.constant 0.000000e+00 : f32
    %91 = vector.broadcast %cst_26 : f32 to vector<16x64xf32>
    %92 = arith.cmpf oge, %90, %91 : vector<16x64xf32>
    %93 = vector.broadcast %3 : vector<1x64xf32> to vector<16x64xf32>
    %94 = arith.mulf %93, %90 : vector<16x64xf32>
    %95 = arith.select %92, %90, %94 : vector<16x64xi1>, vector<16x64xf32>
    %cst_27 = arith.constant dense<0.000000e+00> : vector<2x64xf32>
    %96 = tpu.matmul %20, %95, %cst_27 {dimension_numbers = #tpu.dot_dimension_numbers<[1], [0], [0], [1], [0, 0, 1, 1], [], []>} : vector<2x16xf32>, vector<16x64xf32>, vector<2x64xf32> -> vector<2x64xf32>
    %97 = vector.broadcast %28 : vector<2x1xf32> to vector<2x64xf32>
    %98 = arith.mulf %96, %97 : vector<2x64xf32>
    %99 = vector.extract_strided_slice %98 {offsets = [0, 0], sizes = [1, 64], strides = [1, 1]} : vector<2x64xf32> to vector<1x64xf32>
    %100 = vector.broadcast %32 : vector<16x1xf32> to vector<16x64xf32>
    %101 = vector.broadcast %99 : vector<1x64xf32> to vector<16x64xf32>
    %102 = arith.mulf %100, %101 : vector<16x64xf32>
    %103 = vector.extract_strided_slice %98 {offsets = [1, 0], sizes = [1, 64], strides = [1, 1]} : vector<2x64xf32> to vector<1x64xf32>
    %104 = vector.broadcast %36 : vector<16x1xf32> to vector<16x64xf32>
    %105 = vector.broadcast %103 : vector<1x64xf32> to vector<16x64xf32>
    %106 = arith.mulf %104, %105 : vector<16x64xf32>
    %107 = arith.addf %102, %106 : vector<16x64xf32>
    %108 = vector.broadcast %7 : vector<1x64xf32> to vector<16x64xf32>
    %109 = arith.mulf %108, %107 : vector<16x64xf32>
    %110 = arith.subf %95, %109 : vector<16x64xf32>
    %111 = arith.mulf %110, %110 : vector<16x64xf32>
    %cst_28 = arith.constant dense<0.000000e+00> : vector<2x64xf32>
    %112 = tpu.matmul %20, %111, %cst_28 {dimension_numbers = #tpu.dot_dimension_numbers<[1], [0], [0], [1], [0, 0, 1, 1], [], []>} : vector<2x16xf32>, vector<16x64xf32>, vector<2x64xf32> -> vector<2x64xf32>
    %113 = vector.broadcast %28 : vector<2x1xf32> to vector<2x64xf32>
    %114 = arith.mulf %112, %113 : vector<2x64xf32>
    %115 = vector.broadcast %8 : vector<1x64xf32> to vector<16x64xf32>
    %116 = arith.mulf %115, %110 : vector<16x64xf32>
    %117 = vector.extract_strided_slice %114 {offsets = [0, 0], sizes = [1, 64], strides = [1, 1]} : vector<2x64xf32> to vector<1x64xf32>
    %118 = vector.broadcast %32 : vector<16x1xf32> to vector<16x64xf32>
    %119 = vector.broadcast %117 : vector<1x64xf32> to vector<16x64xf32>
    %120 = arith.mulf %118, %119 : vector<16x64xf32>
    %121 = vector.extract_strided_slice %114 {offsets = [1, 0], sizes = [1, 64], strides = [1, 1]} : vector<2x64xf32> to vector<1x64xf32>
    %122 = vector.broadcast %36 : vector<16x1xf32> to vector<16x64xf32>
    %123 = vector.broadcast %121 : vector<1x64xf32> to vector<16x64xf32>
    %124 = arith.mulf %122, %123 : vector<16x64xf32>
    %125 = arith.addf %120, %124 : vector<16x64xf32>
    %cst_29 = arith.constant 9.99999974E-6 : f32
    %126 = vector.broadcast %cst_29 : f32 to vector<16x64xf32>
    %127 = arith.addf %125, %126 : vector<16x64xf32>
    %128 = math.rsqrt %127 : vector<16x64xf32>
    %129 = arith.mulf %116, %128 : vector<16x64xf32>
    %130 = vector.broadcast %9 : vector<1x64xf32> to vector<16x64xf32>
    %131 = arith.addf %129, %130 : vector<16x64xf32>
    %cst_30 = arith.constant dense<0.000000e+00> : vector<2x64xf32>
    %132 = tpu.matmul %20, %131, %cst_30 {dimension_numbers = #tpu.dot_dimension_numbers<[1], [0], [0], [1], [0, 0, 1, 1], [], []>} : vector<2x16xf32>, vector<16x64xf32>, vector<2x64xf32> -> vector<2x64xf32>
    %133 = vector.broadcast %28 : vector<2x1xf32> to vector<2x64xf32>
    %134 = arith.mulf %132, %133 : vector<2x64xf32>
    %cst_31 = arith.constant 0.000000e+00 : f32
    %135 = vector.broadcast %cst_31 : f32 to vector<16x1xf32>
    %136 = arith.cmpf ogt, %32, %135 : vector<16x1xf32>
    %cst_32 = arith.constant -1.000000e+30 : f32
    %137 = vector.shape_cast %136 : vector<16x1xi1> to vector<16x1xi1>
    %138 = vector.broadcast %137 : vector<16x1xi1> to vector<16x64xi1>
    %139 = vector.broadcast %cst_32 : f32 to vector<16x64xf32>
    %140 = arith.select %138, %131, %139 : vector<16x64xi1>, vector<16x64xf32>
    %cst_33 = arith.constant dense<0xFF800000> : vector<64xf32>
    %141 = vector.multi_reduction <maximumf>, %140, %cst_33 [0] : vector<16x64xf32> to vector<64xf32>
    %142 = vector.shape_cast %141 : vector<64xf32> to vector<1x64xf32>
    %143 = vector.extract_strided_slice %22 {offsets = [0, 0], sizes = [1, 1], strides = [1, 1]} : vector<2x1xf32> to vector<1x1xf32>
    %cst_34 = arith.constant 0.000000e+00 : f32
    %144 = vector.broadcast %cst_34 : f32 to vector<1x1xf32>
    %145 = arith.cmpf ogt, %143, %144 : vector<1x1xf32>
    %cst_35 = arith.constant 0.000000e+00 : f32
    %146 = vector.shape_cast %145 : vector<1x1xi1> to vector<1x1xi1>
    %147 = vector.broadcast %146 : vector<1x1xi1> to vector<1x64xi1>
    %148 = vector.broadcast %cst_35 : f32 to vector<1x64xf32>
    %149 = arith.select %147, %142, %148 : vector<1x64xi1>, vector<1x64xf32>
    %cst_36 = arith.constant 0.000000e+00 : f32
    %150 = vector.broadcast %cst_36 : f32 to vector<16x1xf32>
    %151 = arith.cmpf ogt, %36, %150 : vector<16x1xf32>
    %cst_37 = arith.constant -1.000000e+30 : f32
    %152 = vector.shape_cast %151 : vector<16x1xi1> to vector<16x1xi1>
    %153 = vector.broadcast %152 : vector<16x1xi1> to vector<16x64xi1>
    %154 = vector.broadcast %cst_37 : f32 to vector<16x64xf32>
    %155 = arith.select %153, %131, %154 : vector<16x64xi1>, vector<16x64xf32>
    %cst_38 = arith.constant dense<0xFF800000> : vector<64xf32>
    %156 = vector.multi_reduction <maximumf>, %155, %cst_38 [0] : vector<16x64xf32> to vector<64xf32>
    %157 = vector.shape_cast %156 : vector<64xf32> to vector<1x64xf32>
    %158 = vector.extract_strided_slice %22 {offsets = [1, 0], sizes = [1, 1], strides = [1, 1]} : vector<2x1xf32> to vector<1x1xf32>
    %cst_39 = arith.constant 0.000000e+00 : f32
    %159 = vector.broadcast %cst_39 : f32 to vector<1x1xf32>
    %160 = arith.cmpf ogt, %158, %159 : vector<1x1xf32>
    %cst_40 = arith.constant 0.000000e+00 : f32
    %161 = vector.shape_cast %160 : vector<1x1xi1> to vector<1x1xi1>
    %162 = vector.broadcast %161 : vector<1x1xi1> to vector<1x64xi1>
    %163 = vector.broadcast %cst_40 : f32 to vector<1x64xf32>
    %164 = arith.select %162, %157, %163 : vector<1x64xi1>, vector<1x64xf32>
    %165 = tpu.concatenate %149, %164 in 0 : vector<1x64xf32>, vector<1x64xf32> -> vector<2x64xf32>
    %c0_41 = arith.constant 0 : index
    %c0_42 = arith.constant 0 : index
    %166 = vector.load %arg7[%c0_41, %c0_42] : memref<128x32xf32, #tpu.memory_space<vmem>>, vector<64x32xf32>
    %cst_43 = arith.constant dense<0.000000e+00> : vector<2x32xf32>
    %167 = tpu.matmul %134, %166, %cst_43 {dimension_numbers = #tpu.dot_dimension_numbers<[1], [0], [0], [1], [0, 0, 1, 1], [], []>} : vector<2x64xf32>, vector<64x32xf32>, vector<2x32xf32> -> vector<2x32xf32>
    %c64 = arith.constant 64 : index
    %c0_44 = arith.constant 0 : index
    %168 = vector.load %arg7[%c64, %c0_44] : memref<128x32xf32, #tpu.memory_space<vmem>>, vector<64x32xf32>
    %cst_45 = arith.constant dense<0.000000e+00> : vector<2x32xf32>
    %169 = tpu.matmul %165, %168, %cst_45 {dimension_numbers = #tpu.dot_dimension_numbers<[1], [0], [0], [1], [0, 0, 1, 1], [], []>} : vector<2x64xf32>, vector<64x32xf32>, vector<2x32xf32> -> vector<2x32xf32>
    %170 = arith.addf %167, %169 : vector<2x32xf32>
    %171 = vector.broadcast %10 : vector<1x32xf32> to vector<2x32xf32>
    %172 = arith.addf %170, %171 : vector<2x32xf32>
    %cst_46 = arith.constant 0.000000e+00 : f32
    %173 = vector.broadcast %cst_46 : f32 to vector<2x32xf32>
    %174 = arith.cmpf oge, %172, %173 : vector<2x32xf32>
    %175 = vector.broadcast %11 : vector<1x32xf32> to vector<2x32xf32>
    %176 = arith.mulf %175, %172 : vector<2x32xf32>
    %177 = arith.select %174, %172, %176 : vector<2x32xi1>, vector<2x32xf32>
    %178 = vector.broadcast %12 : vector<1x32xf32> to vector<2x32xf32>
    %179 = arith.mulf %177, %178 : vector<2x32xf32>
    %cst_47 = arith.constant dense<0.000000e+00> : vector<2xf32>
    %180 = vector.multi_reduction <add>, %179, %cst_47 [1] : vector<2x32xf32> to vector<2xf32>
    %181 = vector.shape_cast %180 : vector<2xf32> to vector<2x1xf32>
    %182 = vector.broadcast %13 : vector<1x1xf32> to vector<2x1xf32>
    %183 = arith.addf %181, %182 : vector<2x1xf32>
    %c0_48 = arith.constant 0 : index
    %c0_49 = arith.constant 0 : index
    %184 = vector.load %arg9[%c0_48, %c0_49] : memref<2x1xf32, #tpu.memory_space<vmem>>, vector<2x1xf32>
    tpu.vector_store %arg9[%c0_48, %c0_49], %183 {strides = array<i32>} : memref<2x1xf32, #tpu.memory_space<vmem>>, vector<2x1xf32>,
    return
  }
}

</mosaic_0001>

<llo_original>
// kernel: tpu_custom_call.1
$region0: #{tpu_custom_call.1}
  #allocation0 [shape = 'u32[]', space=smem, size = 0x4, offset = 0x4, fixed_abs, tag = 'smem constant byte address 0x4 - core index']
  #allocation1 [shape = 'u32[144,128]{1,0:T(1,128)}', space=vmem, size = 0x12000, scoped, tag = 'internal scratch']
  %s0 = inlined_call_operand.vmem [shape: f32[16,16], index: 0, kind: input, shape index: {}]
  %s1 = inlined_call_operand.vmem [shape: f32[16,16], index: 1, kind: input, shape index: {}]
  %s2 = inlined_call_operand.vmem [shape: f32[16,32], index: 2, kind: input, shape index: {}]
  %s3 = inlined_call_operand.vmem [shape: s32[1,16], index: 3, kind: input, shape index: {}]
  %s4 = inlined_call_operand.vmem [shape: s32[16,1], index: 4, kind: input, shape index: {}]
  %s5 = inlined_call_operand.vmem [shape: f32[32,64], index: 5, kind: input, shape index: {}]
  %s6 = inlined_call_operand.vmem [shape: f32[64,64], index: 6, kind: input, shape index: {}]
  %s7 = inlined_call_operand.vmem [shape: f32[128,32], index: 7, kind: input, shape index: {}]
  %s8 = inlined_call_operand.vmem [shape: f32[16,64], index: 8, kind: input, shape index: {}]
  %s9 = inlined_call_operand.vmem [shape: f32[2,1], index: 9, kind: output, shape index: {}]
  %s10 = sld [smem:[#allocation0]]
  $region46: #{tpu_custom_call.1} parent=0
    _
  %s12 = ssub.s32 1, %s10
  %s13 = scalar_select 0, %s12, %s10
  // Predicated region
  $region2: #{tpu_custom_call.1} parent=0 // pred_check
    _
  $region3: #{tpu_custom_call.1} parent=0 // pred_check_branch
    %15 = sbr.rel (0) target = $region5
  $region4: #{tpu_custom_call.1} parent=0 // pred_region
    _
  $region5: #{tpu_custom_call.1} parent=0 // pred_fallthru
    _
  // Predicated region
  $region6: #{tpu_custom_call.1} parent=0 // pred_check
    _
  $region7: #{tpu_custom_call.1} parent=0 // pred_check_branch
    %17 = sbr.rel (0) target = $region9
  $region8: #{tpu_custom_call.1} parent=0 // pred_region
    _
  $region9: #{tpu_custom_call.1} parent=0 // pred_fallthru
    _
  // Predicated region
  $region10: #{tpu_custom_call.1} parent=0 // pred_check
    _
  $region11: #{tpu_custom_call.1} parent=0 // pred_check_branch
    %19 = sbr.rel (0) target = $region13
  $region12: #{tpu_custom_call.1} parent=0 // pred_region
    _
  $region13: #{tpu_custom_call.1} parent=0 // pred_fallthru
    _
  // Predicated region
  $region14: #{tpu_custom_call.1} parent=0 // pred_check
    _
  $region15: #{tpu_custom_call.1} parent=0 // pred_check_branch
    %21 = sbr.rel (0) target = $region17
  $region16: #{tpu_custom_call.1} parent=0 // pred_region
    _
  $region17: #{tpu_custom_call.1} parent=0 // pred_fallthru
    _
  // Predicated region
  $region18: #{tpu_custom_call.1} parent=0 // pred_check
    _
  $region19: #{tpu_custom_call.1} parent=0 // pred_check_branch
    %23 = sbr.rel (0) target = $region21
  $region20: #{tpu_custom_call.1} parent=0 // pred_region
    _
  $region21: #{tpu_custom_call.1} parent=0 // pred_fallthru
    _
  // Predicated region
  $region22: #{tpu_custom_call.1} parent=0 // pred_check
    _
  $region23: #{tpu_custom_call.1} parent=0 // pred_check_branch
    %25 = sbr.rel (0) target = $region25
  $region24: #{tpu_custom_call.1} parent=0 // pred_region
    _
  $region25: #{tpu_custom_call.1} parent=0 // pred_fallthru
    _
  // Predicated region
  $region26: #{tpu_custom_call.1} parent=0 // pred_check
    _
  $region27: #{tpu_custom_call.1} parent=0 // pred_check_branch
    %27 = sbr.rel (0) target = $region29
  $region28: #{tpu_custom_call.1} parent=0 // pred_region
    _
  $region29: #{tpu_custom_call.1} parent=0 // pred_fallthru
    _
  // Predicated region
  $region30: #{tpu_custom_call.1} parent=0 // pred_check
    _
  $region31: #{tpu_custom_call.1} parent=0 // pred_check_branch
    %29 = sbr.rel (0) target = $region33
  $region32: #{tpu_custom_call.1} parent=0 // pred_region
    _
  $region33: #{tpu_custom_call.1} parent=0 // pred_fallthru
    _
  // Predicated region
  $region34: #{tpu_custom_call.1} parent=0 // pred_check
    _
  $region35: #{tpu_custom_call.1} parent=0 // pred_check_branch
    %31 = sbr.rel (0) target = $region37
  $region36: #{tpu_custom_call.1} parent=0 // pred_region
    _
  $region37: #{tpu_custom_call.1} parent=0 // pred_fallthru
    _
  %v32 = vld [vmem:[%s8] sm:$0xff]
  %v33 = vld [vmem:[%s8 + $0x8] sm:$0xff]
  %v34 = vld [vmem:[%s3] sm:$0x1]
  %v35 = vld [vmem:[%s4] sm:$0xff]
  %v36 = vld [vmem:[%s4 + $0x8] sm:$0xff]
  %v37 = vlaneseq
  %v38 = vshrl.u32 %v37, 7
  %v39 = vlaneseq
  %v40 = vshrl.u32 %v39, 7
  %v41 = vsub.s32 0, %v40
  %v42 = vrot.slane %v34, %v41
  %vm43 = vcmp.eq.s32.totalorder %v38, %v42
  %v44 = vsel %vm43, 1, 0
  %v45 = vcvt.s32.f32 %v44
  %vm46 = vcmask 123904
  %v47 = vsel %vm46, %v45, 0.0
  %48 = vadd.xlane.f32.xlu0 %v47
  %v49 = vpop.xlane.xlu0 %48
  %vm50 = vcmp.gt.f32.partialorder %v49, 0.0
  %v51 = vrcp.pop %v49
  %v52 = vmul.f32 1.0, %v51
  %v53 = vsel %vm50, %v52, 0.0
  %vm54 = vcmp.eq.s32.totalorder %v35, 0
  %vm55 = vcmp.eq.s32.totalorder %v36, 0
  %v56 = vsel %vm54, 1, 0
  %v57 = vsel %vm55, 1, 0
  %v58 = vcvt.s32.f32 %v56
  %v59 = vcvt.s32.f32 %v57
  %vm60 = vcmp.eq.s32.totalorder %v35, 1
  %vm61 = vcmp.eq.s32.totalorder %v36, 1
  %v62 = vsel %vm60, 1, 0
  %v63 = vsel %vm61, 1, 0
  %v64 = vcvt.s32.f32 %v62
  %v65 = vcvt.s32.f32 %v63
  %v66 = vld [vmem:[%s0] sm:$0xff]
  %v67 = vld [vmem:[%s0 + $0x8] sm:$0xff]
  %v68 = vld [vmem:[%s2] sm:$0xff]
  %v69 = vld [vmem:[%s2 + $0x8] sm:$0xff]
  %vm70 = vcmask 130048
  %v72 = vsel %vm70, %v66, 0
  %v75 = vsel %vm70, %v67, 0
  %77 = vmatprep.subr.mxu0 0.0
  %78 = vmatpush1.msra.mxu0 0.0
  %79 = vmatprep.subr.mxu0 0.0
  %80 = vmatpush1.msra.mxu0 0.0
  %81 = vmatprep.subr.mxu0 0.0
  %82 = vmatpush1.msra.mxu0 0.0
  %83 = vmatprep.subr.mxu0 0.0
  %84 = vmatpush1.msra.mxu0 0.0
  %85 = vmatprep.subr.mxu0 0.0
  %86 = vmatpush1.msra.mxu0 0.0
  %87 = vmatprep.subr.mxu0 0.0
  %88 = vmatpush1.msra.mxu0 0.0
  %89 = vmatprep.subr.mxu0 0.0
  %90 = vmatpush1.msra.mxu0 0.0
  %91 = vmatprep.subr.mxu0 0.0
  %92 = vmatpush1.msra.mxu0 0.0
  %93 = vmatprep.subr.mxu0 0.0
  %94 = vmatpush1.msra.mxu0 0.0
  %95 = vmatprep.subr.mxu0 0.0
  %96 = vmatpush1.msra.mxu0 0.0
  %97 = vmatprep.subr.mxu0 0.0
  %98 = vmatpush1.msra.mxu0 0.0
  %99 = vmatprep.subr.mxu0 0.0
  %100 = vmatpush1.msra.mxu0 0.0
  %101 = vmatprep.subr.mxu0 0.0
  %102 = vmatpush1.msra.mxu0 0.0
  %103 = vmatprep.subr.mxu0 0.0
  %104 = vmatpush1.msra.mxu0 0.0
  %105 = vmatprep.subr.mxu0 0.0
  %106 = vmatpush1.msra.mxu0 %v69
  %107 = vmatprep.subr.mxu0 0.0
  %108 = vmatpush1.msra.mxu0 %v68
  %109 = vmatprep.subr.mxu0 0.0
  %110 = vmatpush2.msra.mxu0 0.0
  %111 = vmatprep.subr.mxu0 0.0
  %112 = vmatpush2.msra.mxu0 0.0
  %113 = vmatprep.subr.mxu0 0.0
  %114 = vmatpush2.msra.mxu0 0.0
  %115 = vmatprep.subr.mxu0 0.0
  %116 = vmatpush2.msra.mxu0 0.0
  %117 = vmatprep.subr.mxu0 0.0
  %118 = vmatpush2.msra.mxu0 0.0
  %119 = vmatprep.subr.mxu0 0.0
  %120 = vmatpush2.msra.mxu0 0.0
  %121 = vmatprep.subr.mxu0 0.0
  %122 = vmatpush2.msra.mxu0 0.0
  %123 = vmatprep.subr.mxu0 0.0
  %124 = vmatpush2.msra.mxu0 0.0
  %125 = vmatprep.subr.mxu0 0.0
  %126 = vmatpush2.msra.mxu0 0.0
  %127 = vmatprep.subr.mxu0 0.0
  %128 = vmatpush2.msra.mxu0 0.0
  %129 = vmatprep.subr.mxu0 0.0
  %130 = vmatpush2.msra.mxu0 0.0
  %131 = vmatprep.subr.mxu0 0.0
  %132 = vmatpush2.msra.mxu0 0.0
  %133 = vmatprep.subr.mxu0 0.0
  %134 = vmatpush2.msra.mxu0 0.0
  %135 = vmatprep.subr.mxu0 0.0
  %136 = vmatpush2.msra.mxu0 0.0
  %137 = vmatprep.subr.mxu0 0.0
  %138 = vmatpush2.msra.mxu0 0.0
  %139 = vmatprep.subr.mxu0 0.0
  %140 = vmatpush2.msra.mxu0 0.0
  %141 = vmatprep.mubr.f32.mxu0 0.0
  %142 = vmatmul.mubr.f32.gmra.mxu0 %v72
  %v143 = vpop.f32.mrf.mxu0
  %v144 = vadd.f32 0.0, %v143
  %v145 = vpop.f32.mrf.mxu0
  %146 = vmatprep.mubr.f32.mxu0 0.0
  %147 = vmatmul.mubr.f32.gmra.mxu0 %v75
  %v148 = vpop.f32.mrf.mxu0
  %v149 = vadd.f32 0.0, %v148
  %v150 = vpop.f32.mrf.mxu0
  %151 = vdwg.mxu0
  %v152 = vld [vmem:[%s5] sm:$0xff]
  %v153 = vld [vmem:[%s5 + $0x8] sm:$0xff]
  %v154 = vld [vmem:[%s5 + $0x10] sm:$0xff]
  %v155 = vld [vmem:[%s5 + $0x18] sm:$0xff]
  %v156 = vlaneseq
  %v157 = vshrl.u32 %v156, 7
  %v158 = vsub.s32 0, %v157
  %v159 = vrot.slane %v32, %v158
  %vm160 = vcmask 261120
  %v162 = vsel %vm160, %v144, 0
  %v165 = vsel %vm160, %v149, 0
  %167 = vmatprep.subr.mxu0 0.0
  %168 = vmatpush1.msra.mxu0 0.0
  %169 = vmatprep.subr.mxu0 0.0
  %170 = vmatpush1.msra.mxu0 0.0
  %171 = vmatprep.subr.mxu0 0.0
  %172 = vmatpush1.msra.mxu0 0.0
  %173 = vmatprep.subr.mxu0 0.0
  %174 = vmatpush1.msra.mxu0 0.0
  %175 = vmatprep.subr.mxu0 0.0
  %176 = vmatpush1.msra.mxu0 0.0
  %177 = vmatprep.subr.mxu0 0.0
  %178 = vmatpush1.msra.mxu0 0.0
  %179 = vmatprep.subr.mxu0 0.0
  %180 = vmatpush1.msra.mxu0 0.0
  %181 = vmatprep.subr.mxu0 0.0
  %182 = vmatpush1.msra.mxu0 0.0
  %183 = vmatprep.subr.mxu0 0.0
  %184 = vmatpush1.msra.mxu0 0.0
  %185 = vmatprep.subr.mxu0 0.0
  %186 = vmatpush1.msra.mxu0 0.0
  %187 = vmatprep.subr.mxu0 0.0
  %188 = vmatpush1.msra.mxu0 0.0
  %189 = vmatprep.subr.mxu0 0.0
  %190 = vmatpush1.msra.mxu0 0.0
  %191 = vmatprep.subr.mxu0 0.0
  %192 = vmatpush1.msra.mxu0 %v155
  %193 = vmatprep.subr.mxu0 0.0
  %194 = vmatpush1.msra.mxu0 %v154
  %195 = vmatprep.subr.mxu0 0.0
  %196 = vmatpush1.msra.mxu0 %v153
  %197 = vmatprep.subr.mxu0 0.0
  %198 = vmatpush1.msra.mxu0 %v152
  %199 = vmatprep.subr.mxu0 0.0
  %200 = vmatpush2.msra.mxu0 0.0
  %201 = vmatprep.subr.mxu0 0.0
  %202 = vmatpush2.msra.mxu0 0.0
  %203 = vmatprep.subr.mxu0 0.0
  %204 = vmatpush2.msra.mxu0 0.0
  %205 = vmatprep.subr.mxu0 0.0
  %206 = vmatpush2.msra.mxu0 0.0
  %207 = vmatprep.subr.mxu0 0.0
  %208 = vmatpush2.msra.mxu0 0.0
  %209 = vmatprep.subr.mxu0 0.0
  %210 = vmatpush2.msra.mxu0 0.0
  %211 = vmatprep.subr.mxu0 0.0
  %212 = vmatpush2.msra.mxu0 0.0
  %213 = vmatprep.subr.mxu0 0.0
  %214 = vmatpush2.msra.mxu0 0.0
  %215 = vmatprep.subr.mxu0 0.0
  %216 = vmatpush2.msra.mxu0 0.0
  %217 = vmatprep.subr.mxu0 0.0
  %218 = vmatpush2.msra.mxu0 0.0
  %219 = vmatprep.subr.mxu0 0.0
  %220 = vmatpush2.msra.mxu0 0.0
  %221 = vmatprep.subr.mxu0 0.0
  %222 = vmatpush2.msra.mxu0 0.0
  %223 = vmatprep.subr.mxu0 0.0
  %224 = vmatpush2.msra.mxu0 0.0
  %225 = vmatprep.subr.mxu0 0.0
  %226 = vmatpush2.msra.mxu0 0.0
  %227 = vmatprep.subr.mxu0 0.0
  %228 = vmatpush2.msra.mxu0 0.0
  %229 = vmatprep.subr.mxu0 0.0
  %230 = vmatpush2.msra.mxu0 0.0
  %231 = vmatprep.mubr.f32.mxu0 0.0
  %232 = vmatmul.mubr.f32.gmra.mxu0 %v162
  %v233 = vpop.f32.mrf.mxu0
  %v234 = vadd.f32 %v159, %v233
  %v235 = vpop.f32.mrf.mxu0
  %236 = vmatprep.mubr.f32.mxu0 0.0
  %237 = vmatmul.mubr.f32.gmra.mxu0 %v165
  %v238 = vpop.f32.mrf.mxu0
  %v239 = vadd.f32 %v159, %v238
  %v240 = vpop.f32.mrf.mxu0
  %241 = vdwg.mxu0
  %v243 = vsel %vm70, %v45, 0
  %245 = vmatprep.subr.mxu0 0.0
  %246 = vmatpush1.msra.mxu0 0.0
  %247 = vmatprep.subr.mxu0 0.0
  %248 = vmatpush1.msra.mxu0 0.0
  %249 = vmatprep.subr.mxu0 0.0
  %250 = vmatpush1.msra.mxu0 0.0
  %251 = vmatprep.subr.mxu0 0.0
  %252 = vmatpush1.msra.mxu0 0.0
  %253 = vmatprep.subr.mxu0 0.0
  %254 = vmatpush1.msra.mxu0 0.0
  %255 = vmatprep.subr.mxu0 0.0
  %256 = vmatpush1.msra.mxu0 0.0
  %257 = vmatprep.subr.mxu0 0.0
  %258 = vmatpush1.msra.mxu0 0.0
  %259 = vmatprep.subr.mxu0 0.0
  %260 = vmatpush1.msra.mxu0 0.0
  %261 = vmatprep.subr.mxu0 0.0
  %262 = vmatpush1.msra.mxu0 0.0
  %263 = vmatprep.subr.mxu0 0.0
  %264 = vmatpush1.msra.mxu0 0.0
  %265 = vmatprep.subr.mxu0 0.0
  %266 = vmatpush1.msra.mxu0 0.0
  %267 = vmatprep.subr.mxu0 0.0
  %268 = vmatpush1.msra.mxu0 0.0
  %269 = vmatprep.subr.mxu0 0.0
  %270 = vmatpush1.msra.mxu0 0.0
  %271 = vmatprep.subr.mxu0 0.0
  %272 = vmatpush1.msra.mxu0 0.0
  %273 = vmatprep.subr.mxu0 0.0
  %274 = vmatpush1.msra.mxu0 %v239
  %275 = vmatprep.subr.mxu0 0.0
  %276 = vmatpush1.msra.mxu0 %v234
  %277 = vmatprep.subr.mxu0 0.0
  %278 = vmatpush2.msra.mxu0 0.0
  %279 = vmatprep.subr.mxu0 0.0
  %280 = vmatpush2.msra.mxu0 0.0
  %281 = vmatprep.subr.mxu0 0.0
  %282 = vmatpush2.msra.mxu0 0.0
  %283 = vmatprep.subr.mxu0 0.0
  %284 = vmatpush2.msra.mxu0 0.0
  %285 = vmatprep.subr.mxu0 0.0
  %286 = vmatpush2.msra.mxu0 0.0
  %287 = vmatprep.subr.mxu0 0.0
  %288 = vmatpush2.msra.mxu0 0.0
  %289 = vmatprep.subr.mxu0 0.0
  %290 = vmatpush2.msra.mxu0 0.0
  %291 = vmatprep.subr.mxu0 0.0
  %292 = vmatpush2.msra.mxu0 0.0
  %293 = vmatprep.subr.mxu0 0.0
  %294 = vmatpush2.msra.mxu0 0.0
  %295 = vmatprep.subr.mxu0 0.0
  %296 = vmatpush2.msra.mxu0 0.0
  %297 = vmatprep.subr.mxu0 0.0
  %298 = vmatpush2.msra.mxu0 0.0
  %299 = vmatprep.subr.mxu0 0.0
  %300 = vmatpush2.msra.mxu0 0.0
  %301 = vmatprep.subr.mxu0 0.0
  %302 = vmatpush2.msra.mxu0 0.0
  %303 = vmatprep.subr.mxu0 0.0
  %304 = vmatpush2.msra.mxu0 0.0
  %305 = vmatprep.subr.mxu0 0.0
  %306 = vmatpush2.msra.mxu0 0.0
  %307 = vmatprep.subr.mxu0 0.0
  %308 = vmatpush2.msra.mxu0 0.0
  %309 = vmatprep.mubr.f32.mxu0 0.0
  %310 = vmatmul.mubr.f32.gmra.mxu0 %v243
  %v311 = vpop.f32.mrf.mxu0
  %v312 = vadd.f32 0.0, %v311
  %v313 = vpop.f32.mrf.mxu0
  %314 = vdwg.mxu0
  %v315 = vmul.f32 %v312, %v53
  %317 = vset.pattern.permute.xlu0 0
  %318 = vperm.xlu0 %317, %v58
  %v319 = vpop.permute.xlu0 %318
  %322 = vset.pattern.permute.xlu0 0
  %323 = vperm.xlu0 %322, %v59
  %v324 = vpop.permute.xlu0 %323
  %v326 = vlaneseq
  %v327 = vshrl.u32 %v326, 7
  %v328 = vsub.s32 0, %v327
  %v329 = vrot.slane %v315, %v328
  %v330 = vmul.f32 %v319, %v329
  %v331 = vmul.f32 %v324, %v329
  %333 = vset.pattern.permute.xlu0 0
  %334 = vperm.xlu0 %333, %v64
  %v335 = vpop.permute.xlu0 %334
  %338 = vset.pattern.permute.xlu0 0
  %339 = vperm.xlu0 %338, %v65
  %v340 = vpop.permute.xlu0 %339
  %v342 = vlaneseq
  %v343 = vshrl.u32 %v342, 7
  %v344 = vsub.s32 1, %v343
  %v345 = vrot.slane %v315, %v344
  %v346 = vmul.f32 %v335, %v345
  %v347 = vmul.f32 %v340, %v345
  %v348 = vadd.f32 %v330, %v346
  %v349 = vadd.f32 %v331, %v347
  %v350 = vlaneseq
  %v351 = vshrl.u32 %v350, 7
  %v352 = vsub.s32 3, %v351
  %v353 = vrot.slane %v32, %v352
  %v354 = vmul.f32 %v353, %v348
  %v355 = vmul.f32 %v353, %v349
  %v356 = vsub.f32 %v234, %v354
  %v357 = vsub.f32 %v239, %v355
  %v358 = vmul.f32 %v356, %v356
  %v359 = vmul.f32 %v357, %v357
  %360 = vmatprep.subr.mxu0 0.0
  %361 = vmatpush1.msra.mxu0 0.0
  %362 = vmatprep.subr.mxu0 0.0
  %363 = vmatpush1.msra.mxu0 0.0
  %364 = vmatprep.subr.mxu0 0.0
  %365 = vmatpush1.msra.mxu0 0.0
  %366 = vmatprep.subr.mxu0 0.0
  %367 = vmatpush1.msra.mxu0 0.0
  %368 = vmatprep.subr.mxu0 0.0
  %369 = vmatpush1.msra.mxu0 0.0
  %370 = vmatprep.subr.mxu0 0.0
  %371 = vmatpush1.msra.mxu0 0.0
  %372 = vmatprep.subr.mxu0 0.0
  %373 = vmatpush1.msra.mxu0 0.0
  %374 = vmatprep.subr.mxu0 0.0
  %375 = vmatpush1.msra.mxu0 0.0
  %376 = vmatprep.subr.mxu0 0.0
  %377 = vmatpush1.msra.mxu0 0.0
  %378 = vmatprep.subr.mxu0 0.0
  %379 = vmatpush1.msra.mxu0 0.0
  %380 = vmatprep.subr.mxu0 0.0
  %381 = vmatpush1.msra.mxu0 0.0
  %382 = vmatprep.subr.mxu0 0.0
  %383 = vmatpush1.msra.mxu0 0.0
  %384 = vmatprep.subr.mxu0 0.0
  %385 = vmatpush1.msra.mxu0 0.0
  %386 = vmatprep.subr.mxu0 0.0
  %387 = vmatpush1.msra.mxu0 0.0
  %388 = vmatprep.subr.mxu0 0.0
  %389 = vmatpush1.msra.mxu0 %v359
  %390 = vmatprep.subr.mxu0 0.0
  %391 = vmatpush1.msra.mxu0 %v358
  %392 = vmatprep.subr.mxu0 0.0
  %393 = vmatpush2.msra.mxu0 0.0
  %394 = vmatprep.subr.mxu0 0.0
  %395 = vmatpush2.msra.mxu0 0.0
  %396 = vmatprep.subr.mxu0 0.0
  %397 = vmatpush2.msra.mxu0 0.0
  %398 = vmatprep.subr.mxu0 0.0
  %399 = vmatpush2.msra.mxu0 0.0
  %400 = vmatprep.subr.mxu0 0.0
  %401 = vmatpush2.msra.mxu0 0.0
  %402 = vmatprep.subr.mxu0 0.0
  %403 = vmatpush2.msra.mxu0 0.0
  %404 = vmatprep.subr.mxu0 0.0
  %405 = vmatpush2.msra.mxu0 0.0
  %406 = vmatprep.subr.mxu0 0.0
  %407 = vmatpush2.msra.mxu0 0.0
  %408 = vmatprep.subr.mxu0 0.0
  %409 = vmatpush2.msra.mxu0 0.0
  %410 = vmatprep.subr.mxu0 0.0
  %411 = vmatpush2.msra.mxu0 0.0
  %412 = vmatprep.subr.mxu0 0.0
  %413 = vmatpush2.msra.mxu0 0.0
  %414 = vmatprep.subr.mxu0 0.0
  %415 = vmatpush2.msra.mxu0 0.0
  %416 = vmatprep.subr.mxu0 0.0
  %417 = vmatpush2.msra.mxu0 0.0
  %418 = vmatprep.subr.mxu0 0.0
  %419 = vmatpush2.msra.mxu0 0.0
  %420 = vmatprep.subr.mxu0 0.0
  %421 = vmatpush2.msra.mxu0 0.0
  %422 = vmatprep.subr.mxu0 0.0
  %423 = vmatpush2.msra.mxu0 0.0
  %424 = vmatprep.mubr.f32.mxu0 0.0
  %425 = vmatmul.mubr.f32.gmra.mxu0 %v243
  %v426 = vpop.f32.mrf.mxu0
  %v427 = vadd.f32 0.0, %v426
  %v428 = vpop.f32.mrf.mxu0
  %429 = vdwg.mxu0
  %v430 = vmul.f32 %v427, %v53
  %v431 = vlaneseq
  %v432 = vshrl.u32 %v431, 7
  %v433 = vsub.s32 4, %v432
  %v434 = vrot.slane %v32, %v433
  %v435 = vmul.f32 %v434, %v356
  %v436 = vmul.f32 %v434, %v357
  %v437 = vlaneseq
  %v438 = vshrl.u32 %v437, 7
  %v439 = vsub.s32 0, %v438
  %v440 = vrot.slane %v430, %v439
  %v441 = vmul.f32 %v319, %v440
  %v442 = vmul.f32 %v324, %v440
  %v443 = vlaneseq
  %v444 = vshrl.u32 %v443, 7
  %v445 = vsub.s32 1, %v444
  %v446 = vrot.slane %v430, %v445
  %v447 = vmul.f32 %v335, %v446
  %v448 = vmul.f32 %v340, %v446
  %v449 = vadd.f32 %v441, %v447
  %v450 = vadd.f32 %v442, %v448
  %v451 = vadd.f32 %v449, 1e-05
  %v452 = vadd.f32 %v450, 1e-05
  %v453 = vrsqrt.pop %v451
  %v454 = vrsqrt.pop %v452
  %v455 = vmul.f32 %v435, %v453
  %v456 = vmul.f32 %v436, %v454
  %v457 = vlaneseq
  %v458 = vshrl.u32 %v457, 7
  %v459 = vsub.s32 5, %v458
  %v460 = vrot.slane %v32, %v459
  %v461 = vadd.f32 %v455, %v460
  %v462 = vadd.f32 %v456, %v460
  %vm463 = vcmp.ge.f32.partialorder %v461, 0.0
  %vm464 = vcmp.ge.f32.partialorder %v462, 0.0
  %v465 = vlaneseq
  %v466 = vshrl.u32 %v465, 7
  %v467 = vsub.s32 2, %v466
  %v468 = vrot.slane %v32, %v467
  %v469 = vmul.f32 %v468, %v461
  %v470 = vmul.f32 %v468, %v462
  %v471 = vsel %vm463, %v461, %v469
  %v472 = vsel %vm464, %v462, %v470
  %v473 = vld [vmem:[%s6] sm:$0xff]
  %v474 = vld [vmem:[%s6 + $0x8] sm:$0xff]
  %v475 = vld [vmem:[%s6 + $0x10] sm:$0xff]
  %v476 = vld [vmem:[%s6 + $0x18] sm:$0xff]
  %v477 = vld [vmem:[%s6 + $0x20] sm:$0xff]
  %v478 = vld [vmem:[%s6 + $0x28] sm:$0xff]
  %v479 = vld [vmem:[%s6 + $0x30] sm:$0xff]
  %v480 = vld [vmem:[%s6 + $0x38] sm:$0xff]
  %vm481 = vcmask 523264
  %v483 = vsel %vm481, %v471, 0
  %v486 = vsel %vm481, %v472, 0
  %488 = vmatprep.subr.mxu0 0.0
  %489 = vmatpush1.msra.mxu0 0.0
  %490 = vmatprep.subr.mxu0 0.0
  %491 = vmatpush1.msra.mxu0 0.0
  %492 = vmatprep.subr.mxu0 0.0
  %493 = vmatpush1.msra.mxu0 0.0
  %494 = vmatprep.subr.mxu0 0.0
  %495 = vmatpush1.msra.mxu0 0.0
  %496 = vmatprep.subr.mxu0 0.0
  %497 = vmatpush1.msra.mxu0 0.0
  %498 = vmatprep.subr.mxu0 0.0
  %499 = vmatpush1.msra.mxu0 0.0
  %500 = vmatprep.subr.mxu0 0.0
  %501 = vmatpush1.msra.mxu0 0.0
  %502 = vmatprep.subr.mxu0 0.0
  %503 = vmatpush1.msra.mxu0 0.0
  %504 = vmatprep.subr.mxu0 0.0
  %505 = vmatpush1.msra.mxu0 %v480
  %506 = vmatprep.subr.mxu0 0.0
  %507 = vmatpush1.msra.mxu0 %v479
  %508 = vmatprep.subr.mxu0 0.0
  %509 = vmatpush1.msra.mxu0 %v478
  %510 = vmatprep.subr.mxu0 0.0
  %511 = vmatpush1.msra.mxu0 %v477
  %512 = vmatprep.subr.mxu0 0.0
  %513 = vmatpush1.msra.mxu0 %v476
  %514 = vmatprep.subr.mxu0 0.0
  %515 = vmatpush1.msra.mxu0 %v475
  %516 = vmatprep.subr.mxu0 0.0
  %517 = vmatpush1.msra.mxu0 %v474
  %518 = vmatprep.subr.mxu0 0.0
  %519 = vmatpush1.msra.mxu0 %v473
  %520 = vmatprep.subr.mxu0 0.0
  %521 = vmatpush2.msra.mxu0 0.0
  %522 = vmatprep.subr.mxu0 0.0
  %523 = vmatpush2.msra.mxu0 0.0
  %524 = vmatprep.subr.mxu0 0.0
  %525 = vmatpush2.msra.mxu0 0.0
  %526 = vmatprep.subr.mxu0 0.0
  %527 = vmatpush2.msra.mxu0 0.0
  %528 = vmatprep.subr.mxu0 0.0
  %529 = vmatpush2.msra.mxu0 0.0
  %530 = vmatprep.subr.mxu0 0.0
  %531 = vmatpush2.msra.mxu0 0.0
  %532 = vmatprep.subr.mxu0 0.0
  %533 = vmatpush2.msra.mxu0 0.0
  %534 = vmatprep.subr.mxu0 0.0
  %535 = vmatpush2.msra.mxu0 0.0
  %536 = vmatprep.subr.mxu0 0.0
  %537 = vmatpush2.msra.mxu0 0.0
  %538 = vmatprep.subr.mxu0 0.0
  %539 = vmatpush2.msra.mxu0 0.0
  %540 = vmatprep.subr.mxu0 0.0
  %541 = vmatpush2.msra.mxu0 0.0
  %542 = vmatprep.subr.mxu0 0.0
  %543 = vmatpush2.msra.mxu0 0.0
  %544 = vmatprep.subr.mxu0 0.0
  %545 = vmatpush2.msra.mxu0 0.0
  %546 = vmatprep.subr.mxu0 0.0
  %547 = vmatpush2.msra.mxu0 0.0
  %548 = vmatprep.subr.mxu0 0.0
  %549 = vmatpush2.msra.mxu0 0.0
  %550 = vmatprep.subr.mxu0 0.0
  %551 = vmatpush2.msra.mxu0 0.0
  %552 = vmatprep.mubr.f32.mxu0 0.0
  %553 = vmatmul.mubr.f32.gmra.mxu0 %v483
  %v554 = vpop.f32.mrf.mxu0
  %v555 = vadd.f32 0.0, %v554
  %v556 = vpop.f32.mrf.mxu0
  %557 = vmatprep.mubr.f32.mxu0 0.0
  %558 = vmatmul.mubr.f32.gmra.mxu0 %v486
  %v559 = vpop.f32.mrf.mxu0
  %v560 = vadd.f32 0.0, %v559
  %v561 = vpop.f32.mrf.mxu0
  %562 = vdwg.mxu0
  %v563 = vld [vmem:[%s1] sm:$0xff]
  %v564 = vld [vmem:[%s1 + $0x8] sm:$0xff]
  %v565 = vlaneseq
  %v566 = vshrl.u32 %v565, 7
  %v567 = vsub.s32 1, %v566
  %v568 = vrot.slane %v32, %v567
  %v570 = vsel %vm70, %v563, 0
  %v573 = vsel %vm70, %v564, 0
  %575 = vmatprep.subr.mxu0 0.0
  %576 = vmatpush1.msra.mxu0 0.0
  %577 = vmatprep.subr.mxu0 0.0
  %578 = vmatpush1.msra.mxu0 0.0
  %579 = vmatprep.subr.mxu0 0.0
  %580 = vmatpush1.msra.mxu0 0.0
  %581 = vmatprep.subr.mxu0 0.0
  %582 = vmatpush1.msra.mxu0 0.0
  %583 = vmatprep.subr.mxu0 0.0
  %584 = vmatpush1.msra.mxu0 0.0
  %585 = vmatprep.subr.mxu0 0.0
  %586 = vmatpush1.msra.mxu0 0.0
  %587 = vmatprep.subr.mxu0 0.0
  %588 = vmatpush1.msra.mxu0 0.0
  %589 = vmatprep.subr.mxu0 0.0
  %590 = vmatpush1.msra.mxu0 0.0
  %591 = vmatprep.subr.mxu0 0.0
  %592 = vmatpush1.msra.mxu0 0.0
  %593 = vmatprep.subr.mxu0 0.0
  %594 = vmatpush1.msra.mxu0 0.0
  %595 = vmatprep.subr.mxu0 0.0
  %596 = vmatpush1.msra.mxu0 0.0
  %597 = vmatprep.subr.mxu0 0.0
  %598 = vmatpush1.msra.mxu0 0.0
  %599 = vmatprep.subr.mxu0 0.0
  %600 = vmatpush1.msra.mxu0 0.0
  %601 = vmatprep.subr.mxu0 0.0
  %602 = vmatpush1.msra.mxu0 0.0
  %603 = vmatprep.subr.mxu0 0.0
  %604 = vmatpush1.msra.mxu0 %v560
  %605 = vmatprep.subr.mxu0 0.0
  %606 = vmatpush1.msra.mxu0 %v555
  %607 = vmatprep.subr.mxu0 0.0
  %608 = vmatpush2.msra.mxu0 0.0
  %609 = vmatprep.subr.mxu0 0.0
  %610 = vmatpush2.msra.mxu0 0.0
  %611 = vmatprep.subr.mxu0 0.0
  %612 = vmatpush2.msra.mxu0 0.0
  %613 = vmatprep.subr.mxu0 0.0
  %614 = vmatpush2.msra.mxu0 0.0
  %615 = vmatprep.subr.mxu0 0.0
  %616 = vmatpush2.msra.mxu0 0.0
  %617 = vmatprep.subr.mxu0 0.0
  %618 = vmatpush2.msra.mxu0 0.0
  %619 = vmatprep.subr.mxu0 0.0
  %620 = vmatpush2.msra.mxu0 0.0
  %621 = vmatprep.subr.mxu0 0.0
  %622 = vmatpush2.msra.mxu0 0.0
  %623 = vmatprep.subr.mxu0 0.0
  %624 = vmatpush2.msra.mxu0 0.0
  %625 = vmatprep.subr.mxu0 0.0
  %626 = vmatpush2.msra.mxu0 0.0
  %627 = vmatprep.subr.mxu0 0.0
  %628 = vmatpush2.msra.mxu0 0.0
  %629 = vmatprep.subr.mxu0 0.0
  %630 = vmatpush2.msra.mxu0 0.0
  %631 = vmatprep.subr.mxu0 0.0
  %632 = vmatpush2.msra.mxu0 0.0
  %633 = vmatprep.subr.mxu0 0.0
  %634 = vmatpush2.msra.mxu0 0.0
  %635 = vmatprep.subr.mxu0 0.0
  %636 = vmatpush2.msra.mxu0 0.0
  %637 = vmatprep.subr.mxu0 0.0
  %638 = vmatpush2.msra.mxu0 0.0
  %639 = vmatprep.mubr.f32.mxu0 0.0
  %640 = vmatmul.mubr.f32.gmra.mxu0 %v570
  %v641 = vpop.f32.mrf.mxu0
  %v642 = vadd.f32 %v568, %v641
  %v643 = vpop.f32.mrf.mxu0
  %644 = vmatprep.mubr.f32.mxu0 0.0
  %645 = vmatmul.mubr.f32.gmra.mxu0 %v573
  %v646 = vpop.f32.mrf.mxu0
  %v647 = vadd.f32 %v568, %v646
  %v648 = vpop.f32.mrf.mxu0
  %649 = vdwg.mxu0
  %vm650 = vcmp.ge.f32.partialorder %v642, 0.0
  %vm651 = vcmp.ge.f32.partialorder %v647, 0.0
  %v652 = vmul.f32 %v468, %v642
  %v653 = vmul.f32 %v468, %v647
  %v654 = vsel %vm650, %v642, %v652
  %v655 = vsel %vm651, %v647, %v653
  %656 = vmatprep.subr.mxu0 0.0
  %657 = vmatpush1.msra.mxu0 0.0
  %658 = vmatprep.subr.mxu0 0.0
  %659 = vmatpush1.msra.mxu0 0.0
  %660 = vmatprep.subr.mxu0 0.0
  %661 = vmatpush1.msra.mxu0 0.0
  %662 = vmatprep.subr.mxu0 0.0
  %663 = vmatpush1.msra.mxu0 0.0
  %664 = vmatprep.subr.mxu0 0.0
  %665 = vmatpush1.msra.mxu0 0.0
  %666 = vmatprep.subr.mxu0 0.0
  %667 = vmatpush1.msra.mxu0 0.0
  %668 = vmatprep.subr.mxu0 0.0
  %669 = vmatpush1.msra.mxu0 0.0
  %670 = vmatprep.subr.mxu0 0.0
  %671 = vmatpush1.msra.mxu0 0.0
  %672 = vmatprep.subr.mxu0 0.0
  %673 = vmatpush1.msra.mxu0 0.0
  %674 = vmatprep.subr.mxu0 0.0
  %675 = vmatpush1.msra.mxu0 0.0
  %676 = vmatprep.subr.mxu0 0.0
  %677 = vmatpush1.msra.mxu0 0.0
  %678 = vmatprep.subr.mxu0 0.0
  %679 = vmatpush1.msra.mxu0 0.0
  %680 = vmatprep.subr.mxu0 0.0
  %681 = vmatpush1.msra.mxu0 0.0
  %682 = vmatprep.subr.mxu0 0.0
  %683 = vmatpush1.msra.mxu0 0.0
  %684 = vmatprep.subr.mxu0 0.0
  %685 = vmatpush1.msra.mxu0 %v655
  %686 = vmatprep.subr.mxu0 0.0
  %687 = vmatpush1.msra.mxu0 %v654
  %688 = vmatprep.subr.mxu0 0.0
  %689 = vmatpush2.msra.mxu0 0.0
  %690 = vmatprep.subr.mxu0 0.0
  %691 = vmatpush2.msra.mxu0 0.0
  %692 = vmatprep.subr.mxu0 0.0
  %693 = vmatpush2.msra.mxu0 0.0
  %694 = vmatprep.subr.mxu0 0.0
  %695 = vmatpush2.msra.mxu0 0.0
  %696 = vmatprep.subr.mxu0 0.0
  %697 = vmatpush2.msra.mxu0 0.0
  %698 = vmatprep.subr.mxu0 0.0
  %699 = vmatpush2.msra.mxu0 0.0
  %700 = vmatprep.subr.mxu0 0.0
  %701 = vmatpush2.msra.mxu0 0.0
  %702 = vmatprep.subr.mxu0 0.0
  %703 = vmatpush2.msra.mxu0 0.0
  %704 = vmatprep.subr.mxu0 0.0
  %705 = vmatpush2.msra.mxu0 0.0
  %706 = vmatprep.subr.mxu0 0.0
  %707 = vmatpush2.msra.mxu0 0.0
  %708 = vmatprep.subr.mxu0 0.0
  %709 = vmatpush2.msra.mxu0 0.0
  %710 = vmatprep.subr.mxu0 0.0
  %711 = vmatpush2.msra.mxu0 0.0
  %712 = vmatprep.subr.mxu0 0.0
  %713 = vmatpush2.msra.mxu0 0.0
  %714 = vmatprep.subr.mxu0 0.0
  %715 = vmatpush2.msra.mxu0 0.0
  %716 = vmatprep.subr.mxu0 0.0
  %717 = vmatpush2.msra.mxu0 0.0
  %718 = vmatprep.subr.mxu0 0.0
  %719 = vmatpush2.msra.mxu0 0.0
  %720 = vmatprep.mubr.f32.mxu0 0.0
  %721 = vmatmul.mubr.f32.gmra.mxu0 %v243
  %v722 = vpop.f32.mrf.mxu0
  %v723 = vadd.f32 0.0, %v722
  %v724 = vpop.f32.mrf.mxu0
  %725 = vdwg.mxu0
  %v726 = vmul.f32 %v723, %v53
  %v727 = vlaneseq
  %v728 = vshrl.u32 %v727, 7
  %v729 = vsub.s32 0, %v728
  %v730 = vrot.slane %v726, %v729
  %v731 = vmul.f32 %v319, %v730
  %v732 = vmul.f32 %v324, %v730
  %v733 = vlaneseq
  %v734 = vshrl.u32 %v733, 7
  %v735 = vsub.s32 1, %v734
  %v736 = vrot.slane %v726, %v735
  %v737 = vmul.f32 %v335, %v736
  %v738 = vmul.f32 %v340, %v736
  %v739 = vadd.f32 %v731, %v737
  %v740 = vadd.f32 %v732, %v738
  %v741 = vlaneseq
  %v742 = vshrl.u32 %v741, 7
  %v743 = vsub.s32 6, %v742
  %v744 = vrot.slane %v32, %v743
  %v745 = vmul.f32 %v744, %v739
  %v746 = vmul.f32 %v744, %v740
  %v747 = vsub.f32 %v654, %v745
  %v748 = vsub.f32 %v655, %v746
  %v749 = vmul.f32 %v747, %v747
  %v750 = vmul.f32 %v748, %v748
  %751 = vmatprep.subr.mxu0 0.0
  %752 = vmatpush1.msra.mxu0 0.0
  %753 = vmatprep.subr.mxu0 0.0
  %754 = vmatpush1.msra.mxu0 0.0
  %755 = vmatprep.subr.mxu0 0.0
  %756 = vmatpush1.msra.mxu0 0.0
  %757 = vmatprep.subr.mxu0 0.0
  %758 = vmatpush1.msra.mxu0 0.0
  %759 = vmatprep.subr.mxu0 0.0
  %760 = vmatpush1.msra.mxu0 0.0
  %761 = vmatprep.subr.mxu0 0.0
  %762 = vmatpush1.msra.mxu0 0.0
  %763 = vmatprep.subr.mxu0 0.0
  %764 = vmatpush1.msra.mxu0 0.0
  %765 = vmatprep.subr.mxu0 0.0
  %766 = vmatpush1.msra.mxu0 0.0
  %767 = vmatprep.subr.mxu0 0.0
  %768 = vmatpush1.msra.mxu0 0.0
  %769 = vmatprep.subr.mxu0 0.0
  %770 = vmatpush1.msra.mxu0 0.0
  %771 = vmatprep.subr.mxu0 0.0
  %772 = vmatpush1.msra.mxu0 0.0
  %773 = vmatprep.subr.mxu0 0.0
  %774 = vmatpush1.msra.mxu0 0.0
  %775 = vmatprep.subr.mxu0 0.0
  %776 = vmatpush1.msra.mxu0 0.0
  %777 = vmatprep.subr.mxu0 0.0
  %778 = vmatpush1.msra.mxu0 0.0
  %779 = vmatprep.subr.mxu0 0.0
  %780 = vmatpush1.msra.mxu0 %v750
  %781 = vmatprep.subr.mxu0 0.0
  %782 = vmatpush1.msra.mxu0 %v749
  %783 = vmatprep.subr.mxu0 0.0
  %784 = vmatpush2.msra.mxu0 0.0
  %785 = vmatprep.subr.mxu0 0.0
  %786 = vmatpush2.msra.mxu0 0.0
  %787 = vmatprep.subr.mxu0 0.0
  %788 = vmatpush2.msra.mxu0 0.0
  %789 = vmatprep.subr.mxu0 0.0
  %790 = vmatpush2.msra.mxu0 0.0
  %791 = vmatprep.subr.mxu0 0.0
  %792 = vmatpush2.msra.mxu0 0.0
  %793 = vmatprep.subr.mxu0 0.0
  %794 = vmatpush2.msra.mxu0 0.0
  %795 = vmatprep.subr.mxu0 0.0
  %796 = vmatpush2.msra.mxu0 0.0
  %797 = vmatprep.subr.mxu0 0.0
  %798 = vmatpush2.msra.mxu0 0.0
  %799 = vmatprep.subr.mxu0 0.0
  %800 = vmatpush2.msra.mxu0 0.0
  %801 = vmatprep.subr.mxu0 0.0
  %802 = vmatpush2.msra.mxu0 0.0
  %803 = vmatprep.subr.mxu0 0.0
  %804 = vmatpush2.msra.mxu0 0.0
  %805 = vmatprep.subr.mxu0 0.0
  %806 = vmatpush2.msra.mxu0 0.0
  %807 = vmatprep.subr.mxu0 0.0
  %808 = vmatpush2.msra.mxu0 0.0
  %809 = vmatprep.subr.mxu0 0.0
  %810 = vmatpush2.msra.mxu0 0.0
  %811 = vmatprep.subr.mxu0 0.0
  %812 = vmatpush2.msra.mxu0 0.0
  %813 = vmatprep.subr.mxu0 0.0
  %814 = vmatpush2.msra.mxu0 0.0
  %815 = vmatprep.mubr.f32.mxu0 0.0
  %816 = vmatmul.mubr.f32.gmra.mxu0 %v243
  %v817 = vpop.f32.mrf.mxu0
  %v818 = vadd.f32 0.0, %v817
  %v819 = vpop.f32.mrf.mxu0
  %820 = vdwg.mxu0
  %v821 = vmul.f32 %v818, %v53
  %v822 = vlaneseq
  %v823 = vshrl.u32 %v822, 7
  %v824 = vsub.s32 7, %v823
  %v825 = vrot.slane %v32, %v824
  %v826 = vmul.f32 %v825, %v747
  %v827 = vmul.f32 %v825, %v748
  %v828 = vlaneseq
  %v829 = vshrl.u32 %v828, 7
  %v830 = vsub.s32 0, %v829
  %v831 = vrot.slane %v821, %v830
  %v832 = vmul.f32 %v319, %v831
  %v833 = vmul.f32 %v324, %v831
  %v834 = vlaneseq
  %v835 = vshrl.u32 %v834, 7
  %v836 = vsub.s32 1, %v835
  %v837 = vrot.slane %v821, %v836
  %v838 = vmul.f32 %v335, %v837
  %v839 = vmul.f32 %v340, %v837
  %v840 = vadd.f32 %v832, %v838
  %v841 = vadd.f32 %v833, %v839
  %v842 = vadd.f32 %v840, 1e-05
  %v843 = vadd.f32 %v841, 1e-05
  %v844 = vrsqrt.pop %v842
  %v845 = vrsqrt.pop %v843
  %v846 = vmul.f32 %v826, %v844
  %v847 = vmul.f32 %v827, %v845
  %v848 = vlaneseq
  %v849 = vshrl.u32 %v848, 7
  %v850 = vsub.s32 0, %v849
  %v851 = vrot.slane %v33, %v850
  %v852 = vadd.f32 %v846, %v851
  %v853 = vadd.f32 %v847, %v851
  %854 = vmatprep.subr.mxu0 0.0
  %855 = vmatpush1.msra.mxu0 0.0
  %856 = vmatprep.subr.mxu0 0.0
  %857 = vmatpush1.msra.mxu0 0.0
  %858 = vmatprep.subr.mxu0 0.0
  %859 = vmatpush1.msra.mxu0 0.0
  %860 = vmatprep.subr.mxu0 0.0
  %861 = vmatpush1.msra.mxu0 0.0
  %862 = vmatprep.subr.mxu0 0.0
  %863 = vmatpush1.msra.mxu0 0.0
  %864 = vmatprep.subr.mxu0 0.0
  %865 = vmatpush1.msra.mxu0 0.0
  %866 = vmatprep.subr.mxu0 0.0
  %867 = vmatpush1.msra.mxu0 0.0
  %868 = vmatprep.subr.mxu0 0.0
  %869 = vmatpush1.msra.mxu0 0.0
  %870 = vmatprep.subr.mxu0 0.0
  %871 = vmatpush1.msra.mxu0 0.0
  %872 = vmatprep.subr.mxu0 0.0
  %873 = vmatpush1.msra.mxu0 0.0
  %874 = vmatprep.subr.mxu0 0.0
  %875 = vmatpush1.msra.mxu0 0.0
  %876 = vmatprep.subr.mxu0 0.0
  %877 = vmatpush1.msra.mxu0 0.0
  %878 = vmatprep.subr.mxu0 0.0
  %879 = vmatpush1.msra.mxu0 0.0
  %880 = vmatprep.subr.mxu0 0.0
  %881 = vmatpush1.msra.mxu0 0.0
  %882 = vmatprep.subr.mxu0 0.0
  %883 = vmatpush1.msra.mxu0 %v853
  %884 = vmatprep.subr.mxu0 0.0
  %885 = vmatpush1.msra.mxu0 %v852
  %886 = vmatprep.subr.mxu0 0.0
  %887 = vmatpush2.msra.mxu0 0.0
  %888 = vmatprep.subr.mxu0 0.0
  %889 = vmatpush2.msra.mxu0 0.0
  %890 = vmatprep.subr.mxu0 0.0
  %891 = vmatpush2.msra.mxu0 0.0
  %892 = vmatprep.subr.mxu0 0.0
  %893 = vmatpush2.msra.mxu0 0.0
  %894 = vmatprep.subr.mxu0 0.0
  %895 = vmatpush2.msra.mxu0 0.0
  %896 = vmatprep.subr.mxu0 0.0
  %897 = vmatpush2.msra.mxu0 0.0
  %898 = vmatprep.subr.mxu0 0.0
  %899 = vmatpush2.msra.mxu0 0.0
  %900 = vmatprep.subr.mxu0 0.0
  %901 = vmatpush2.msra.mxu0 0.0
  %902 = vmatprep.subr.mxu0 0.0
  %903 = vmatpush2.msra.mxu0 0.0
  %904 = vmatprep.subr.mxu0 0.0
  %905 = vmatpush2.msra.mxu0 0.0
  %906 = vmatprep.subr.mxu0 0.0
  %907 = vmatpush2.msra.mxu0 0.0
  %908 = vmatprep.subr.mxu0 0.0
  %909 = vmatpush2.msra.mxu0 0.0
  %910 = vmatprep.subr.mxu0 0.0
  %911 = vmatpush2.msra.mxu0 0.0
  %912 = vmatprep.subr.mxu0 0.0
  %913 = vmatpush2.msra.mxu0 0.0
  %914 = vmatprep.subr.mxu0 0.0
  %915 = vmatpush2.msra.mxu0 0.0
  %916 = vmatprep.subr.mxu0 0.0
  %917 = vmatpush2.msra.mxu0 0.0
  %918 = vmatprep.mubr.f32.mxu0 0.0
  %919 = vmatmul.mubr.f32.gmra.mxu0 %v243
  %v920 = vpop.f32.mrf.mxu0
  %v921 = vadd.f32 0.0, %v920
  %v922 = vpop.f32.mrf.mxu0
  %923 = vdwg.mxu0
  %v924 = vmul.f32 %v921, %v53
  %vm925 = vcmp.gt.f32.partialorder %v58, 0.0
  %vm926 = vcmp.gt.f32.partialorder %v59, 0.0
  %v927 = vsel %vm925, 1, 0
  %v928 = vsel %vm926, 1, 0
  %929 = vset.pattern.permute.xlu0 0
  %930 = vperm.xlu0 %929, %v927
  %v931 = vpop.permute.xlu0 %930
  %932 = vset.pattern.permute.xlu0 0
  %933 = vperm.xlu0 %932, %v928
  %v934 = vpop.permute.xlu0 %933
  %vm935 = vcmp.eq.s32.totalorder %v931, 1
  %vm936 = vcmp.eq.s32.totalorder %v934, 1
  %v937 = vsel %vm935, %v852, -1e+30
  %v938 = vsel %vm936, %v853, -1e+30
  %v939 = vsel %vm481, %v937, -inf
  %v940 = vsel %vm481, %v938, -inf
  %v941 = vmax.f32 %v939, %v940
  %v942 = vrot.slane %v941, 4
  %v943 = vmax.f32 %v941, %v942
  %v944 = vrot.slane %v943, 2
  %v945 = vmax.f32 %v943, %v944
  %v946 = vrot.slane %v945, 1
  %v947 = vmax.f32 %v945, %v946
  %v948 = vsel %vm50, 1, 0
  %vm949 = vcmp.eq.s32.totalorder %v948, 1
  %v950 = vsel %vm949, %v947, 0.0
  %vm951 = vcmp.gt.f32.partialorder %v64, 0.0
  %vm952 = vcmp.gt.f32.partialorder %v65, 0.0
  %v953 = vsel %vm951, 1, 0
  %v954 = vsel %vm952, 1, 0
  %955 = vset.pattern.permute.xlu0 0
  %956 = vperm.xlu0 %955, %v953
  %v957 = vpop.permute.xlu0 %956
  %958 = vset.pattern.permute.xlu0 0
  %959 = vperm.xlu0 %958, %v954
  %v960 = vpop.permute.xlu0 %959
  %vm961 = vcmp.eq.s32.totalorder %v957, 1
  %vm962 = vcmp.eq.s32.totalorder %v960, 1
  %v963 = vsel %vm961, %v852, -1e+30
  %v964 = vsel %vm962, %v853, -1e+30
  %v965 = vsel %vm481, %v963, -inf
  %v966 = vsel %vm481, %v964, -inf
  %v967 = vmax.f32 %v965, %v966
  %v968 = vrot.slane %v967, 4
  %v969 = vmax.f32 %v967, %v968
  %v970 = vrot.slane %v969, 2
  %v971 = vmax.f32 %v969, %v970
  %v972 = vrot.slane %v971, 1
  %v973 = vmax.f32 %v971, %v972
  %v974 = vsel %vm949, %v973, 0.0
  %vm975 = vcmask 1040384
  %v976 = vsel %vm975, %v950, %v974
  %v977 = vld [vmem:[%s7] sm:$0xff]
  %v978 = vld [vmem:[%s7 + $0x8] sm:$0xff]
  %v979 = vld [vmem:[%s7 + $0x10] sm:$0xff]
  %v980 = vld [vmem:[%s7 + $0x18] sm:$0xff]
  %v981 = vld [vmem:[%s7 + $0x20] sm:$0xff]
  %v982 = vld [vmem:[%s7 + $0x28] sm:$0xff]
  %v983 = vld [vmem:[%s7 + $0x30] sm:$0xff]
  %v984 = vld [vmem:[%s7 + $0x38] sm:$0xff]
  %v985 = vld [vmem:[%s7 + $0x40] sm:$0xff]
  %v986 = vld [vmem:[%s7 + $0x48] sm:$0xff]
  %v987 = vld [vmem:[%s7 + $0x50] sm:$0xff]
  %v988 = vld [vmem:[%s7 + $0x58] sm:$0xff]
  %v989 = vld [vmem:[%s7 + $0x60] sm:$0xff]
  %v990 = vld [vmem:[%s7 + $0x68] sm:$0xff]
  %v991 = vld [vmem:[%s7 + $0x70] sm:$0xff]
  %v992 = vld [vmem:[%s7 + $0x78] sm:$0xff]
  %v994 = vsel %vm481, %v976, 0
  %996 = vmatprep.subr.mxu0 0.0
  %997 = vmatpush1.msra.mxu0 0.0
  %998 = vmatprep.subr.mxu0 0.0
  %999 = vmatpush1.msra.mxu0 0.0
  %1000 = vmatprep.subr.mxu0 0.0
  %1001 = vmatpush1.msra.mxu0 0.0
  %1002 = vmatprep.subr.mxu0 0.0
  %1003 = vmatpush1.msra.mxu0 0.0
  %1004 = vmatprep.subr.mxu0 0.0
  %1005 = vmatpush1.msra.mxu0 0.0
  %1006 = vmatprep.subr.mxu0 0.0
  %1007 = vmatpush1.msra.mxu0 0.0
  %1008 = vmatprep.subr.mxu0 0.0
  %1009 = vmatpush1.msra.mxu0 0.0
  %1010 = vmatprep.subr.mxu0 0.0
  %1011 = vmatpush1.msra.mxu0 0.0
  %1012 = vmatprep.subr.mxu0 0.0
  %1013 = vmatpush1.msra.mxu0 %v992
  %1014 = vmatprep.subr.mxu0 0.0
  %1015 = vmatpush1.msra.mxu0 %v991
  %1016 = vmatprep.subr.mxu0 0.0
  %1017 = vmatpush1.msra.mxu0 %v990
  %1018 = vmatprep.subr.mxu0 0.0
  %1019 = vmatpush1.msra.mxu0 %v989
  %1020 = vmatprep.subr.mxu0 0.0
  %1021 = vmatpush1.msra.mxu0 %v988
  %1022 = vmatprep.subr.mxu0 0.0
  %1023 = vmatpush1.msra.mxu0 %v987
  %1024 = vmatprep.subr.mxu0 0.0
  %1025 = vmatpush1.msra.mxu0 %v986
  %1026 = vmatprep.subr.mxu0 0.0
  %1027 = vmatpush1.msra.mxu0 %v985
  %1028 = vmatprep.subr.mxu0 0.0
  %1029 = vmatpush2.msra.mxu0 0.0
  %1030 = vmatprep.subr.mxu0 0.0
  %1031 = vmatpush2.msra.mxu0 0.0
  %1032 = vmatprep.subr.mxu0 0.0
  %1033 = vmatpush2.msra.mxu0 0.0
  %1034 = vmatprep.subr.mxu0 0.0
  %1035 = vmatpush2.msra.mxu0 0.0
  %1036 = vmatprep.subr.mxu0 0.0
  %1037 = vmatpush2.msra.mxu0 0.0
  %1038 = vmatprep.subr.mxu0 0.0
  %1039 = vmatpush2.msra.mxu0 0.0
  %1040 = vmatprep.subr.mxu0 0.0
  %1041 = vmatpush2.msra.mxu0 0.0
  %1042 = vmatprep.subr.mxu0 0.0
  %1043 = vmatpush2.msra.mxu0 0.0
  %1044 = vmatprep.subr.mxu0 0.0
  %1045 = vmatpush2.msra.mxu0 0.0
  %1046 = vmatprep.subr.mxu0 0.0
  %1047 = vmatpush2.msra.mxu0 0.0
  %1048 = vmatprep.subr.mxu0 0.0
  %1049 = vmatpush2.msra.mxu0 0.0
  %1050 = vmatprep.subr.mxu0 0.0
  %1051 = vmatpush2.msra.mxu0 0.0
  %1052 = vmatprep.subr.mxu0 0.0
  %1053 = vmatpush2.msra.mxu0 0.0
  %1054 = vmatprep.subr.mxu0 0.0
  %1055 = vmatpush2.msra.mxu0 0.0
  %1056 = vmatprep.subr.mxu0 0.0
  %1057 = vmatpush2.msra.mxu0 0.0
  %1058 = vmatprep.subr.mxu0 0.0
  %1059 = vmatpush2.msra.mxu0 0.0
  %1060 = vmatprep.mubr.f32.mxu0 0.0
  %1061 = vmatmul.mubr.f32.gmra.mxu0 %v994
  %v1062 = vpop.f32.mrf.mxu0
  %v1063 = vadd.f32 0.0, %v1062
  %v1064 = vpop.f32.mrf.mxu0
  %1065 = vdwg.mxu0
  %v1067 = vsel %vm481, %v924, 0
  %1069 = vmatprep.subr.mxu0 0.0
  %1070 = vmatpush1.msra.mxu0 0.0
  %1071 = vmatprep.subr.mxu0 0.0
  %1072 = vmatpush1.msra.mxu0 0.0
  %1073 = vmatprep.subr.mxu0 0.0
  %1074 = vmatpush1.msra.mxu0 0.0
  %1075 = vmatprep.subr.mxu0 0.0
  %1076 = vmatpush1.msra.mxu0 0.0
  %1077 = vmatprep.subr.mxu0 0.0
  %1078 = vmatpush1.msra.mxu0 0.0
  %1079 = vmatprep.subr.mxu0 0.0
  %1080 = vmatpush1.msra.mxu0 0.0
  %1081 = vmatprep.subr.mxu0 0.0
  %1082 = vmatpush1.msra.mxu0 0.0
  %1083 = vmatprep.subr.mxu0 0.0
  %1084 = vmatpush1.msra.mxu0 0.0
  %1085 = vmatprep.subr.mxu0 0.0
  %1086 = vmatpush1.msra.mxu0 %v984
  %1087 = vmatprep.subr.mxu0 0.0
  %1088 = vmatpush1.msra.mxu0 %v983
  %1089 = vmatprep.subr.mxu0 0.0
  %1090 = vmatpush1.msra.mxu0 %v982
  %1091 = vmatprep.subr.mxu0 0.0
  %1092 = vmatpush1.msra.mxu0 %v981
  %1093 = vmatprep.subr.mxu0 0.0
  %1094 = vmatpush1.msra.mxu0 %v980
  %1095 = vmatprep.subr.mxu0 0.0
  %1096 = vmatpush1.msra.mxu0 %v979
  %1097 = vmatprep.subr.mxu0 0.0
  %1098 = vmatpush1.msra.mxu0 %v978
  %1099 = vmatprep.subr.mxu0 0.0
  %1100 = vmatpush1.msra.mxu0 %v977
  %1101 = vmatprep.subr.mxu0 0.0
  %1102 = vmatpush2.msra.mxu0 0.0
  %1103 = vmatprep.subr.mxu0 0.0
  %1104 = vmatpush2.msra.mxu0 0.0
  %1105 = vmatprep.subr.mxu0 0.0
  %1106 = vmatpush2.msra.mxu0 0.0
  %1107 = vmatprep.subr.mxu0 0.0
  %1108 = vmatpush2.msra.mxu0 0.0
  %1109 = vmatprep.subr.mxu0 0.0
  %1110 = vmatpush2.msra.mxu0 0.0
  %1111 = vmatprep.subr.mxu0 0.0
  %1112 = vmatpush2.msra.mxu0 0.0
  %1113 = vmatprep.subr.mxu0 0.0
  %1114 = vmatpush2.msra.mxu0 0.0
  %1115 = vmatprep.subr.mxu0 0.0
  %1116 = vmatpush2.msra.mxu0 0.0
  %1117 = vmatprep.subr.mxu0 0.0
  %1118 = vmatpush2.msra.mxu0 0.0
  %1119 = vmatprep.subr.mxu0 0.0
  %1120 = vmatpush2.msra.mxu0 0.0
  %1121 = vmatprep.subr.mxu0 0.0
  %1122 = vmatpush2.msra.mxu0 0.0
  %1123 = vmatprep.subr.mxu0 0.0
  %1124 = vmatpush2.msra.mxu0 0.0
  %1125 = vmatprep.subr.mxu0 0.0
  %1126 = vmatpush2.msra.mxu0 0.0
  %1127 = vmatprep.subr.mxu0 0.0
  %1128 = vmatpush2.msra.mxu0 0.0
  %1129 = vmatprep.subr.mxu0 0.0
  %1130 = vmatpush2.msra.mxu0 0.0
  %1131 = vmatprep.subr.mxu0 0.0
  %1132 = vmatpush2.msra.mxu0 0.0
  %1133 = vmatprep.mubr.f32.mxu0 0.0
  %1134 = vmatmul.mubr.f32.gmra.mxu0 %v1067
  %v1135 = vpop.f32.mrf.mxu0
  %v1136 = vadd.f32 %v1063, %v1135
  %v1137 = vpop.f32.mrf.mxu0
  %1138 = vdwg.mxu0
  %v1139 = vlaneseq
  %v1140 = vshrl.u32 %v1139, 7
  %v1141 = vsub.s32 1, %v1140
  %v1142 = vrot.slane %v33, %v1141
  %v1143 = vadd.f32 %v1136, %v1142
  %vm1144 = vcmp.ge.f32.partialorder %v1143, 0.0
  %v1145 = vlaneseq
  %v1146 = vshrl.u32 %v1145, 7
  %v1147 = vsub.s32 2, %v1146
  %v1148 = vrot.slane %v33, %v1147
  %v1149 = vmul.f32 %v1148, %v1143
  %v1150 = vsel %vm1144, %v1143, %v1149
  %v1151 = vlaneseq
  %v1152 = vshrl.u32 %v1151, 7
  %v1153 = vsub.s32 3, %v1152
  %v1154 = vrot.slane %v33, %v1153
  %v1155 = vmul.f32 %v1150, %v1154
  %vm1156 = vcmask 254976
  %v1157 = vsel %vm1156, %v1155, 0.0
  %1158 = vadd.xlane.f32.xlu0 %v1157
  %v1159 = vpop.xlane.xlu0 %1158
  %v1160 = vlaneseq
  %v1161 = vshrl.u32 %v1160, 7
  %v1162 = vsub.s32 4, %v1161
  %v1163 = vrot.slane %v33, %v1162
  %v1164 = vadd.f32 %v1159, %v1163
  %vm1165 = vcmask 1024
  %1166 = vst.msk [vmem:[%s9] sm:$0x3] %vm1165, %v1164
  // Predicated region
  $region38: #{tpu_custom_call.1} parent=0 // pred_check
    _
  $region39: #{tpu_custom_call.1} parent=0 // pred_check_branch
    %1168 = sbr.rel (0) target = $region41
  $region40: #{tpu_custom_call.1} parent=0 // pred_region
    _
  $region41: #{tpu_custom_call.1} parent=0 // pred_fallthru
    _
  // Predicated region
  $region42: #{tpu_custom_call.1} parent=0 // pred_check
    _
  $region43: #{tpu_custom_call.1} parent=0 // pred_check_branch
    %1170 = sbr.rel (0) target = $region45
  $region44: #{tpu_custom_call.1} parent=0 // pred_region
    _
  $region45: #{tpu_custom_call.1} parent=0 // pred_fallthru
    _

</llo_original>
